<compile_context>
chip_gen: v7x
topology: tpu7x:2x2x1
jax: 0.10.0
libtpu: 0.0.40
codegen_flags: <defaults>
</compile_context>

<pallas_src>
import jax
import jax.numpy as jnp
from jax.experimental import pallas as pl
from jax.experimental.pallas import tpu as pltpu

# ---- model hyper-parameters (small, consistent with the module) ----
INPUT_DIM = 32    # encoder vocab
OUTPUT_DIM = 32   # decoder vocab (trg_vocab_size)
EMB_DIM = 16
HID_DIM = 32
N_LAYERS = 2
BATCH = 8
SRC_LEN = 10
TRG_LEN = 8

E_PAD = HID_DIM   # layer-0 input zero-padded to HID_DIM lanes (uniform fused K)
V_PAD = 128       # lane-dense (one f32 vreg row) vocab padding
assert EMB_DIM <= E_PAD


# --------------------------------------------------------------------------
# shared LSTM-stack step (used by both kernels)
# --------------------------------------------------------------------------
def _lstm_stack_step(x, h_ref, c_ref, w_ref, b_ref, n_layers, hid):
    """One timestep through the n_layers LSTM stack.

    x      : [B, E_PAD] f32 input to layer 0.
    h_ref  : [L, B, H] ref (recurrent carry, read+write).
    c_ref  : [L, B, H] ref (recurrent carry, read+write).
    w_ref  : [L, E_PAD + H, 4H] bf16 fused (ih | hh) weights.
    b_ref  : [L, 1, 4H] f32 fused (bih + bhh) biases.
    Returns the top-layer output [B, H] f32.
    """
    for l in range(n_layers):
        h_prev = h_ref[l]                                  # [B, H] f32
        c_prev = c_ref[l]                                  # [B, H] f32
        # fused input: [x | h_prev] -> one matmul per layer instead of two
        xh = jnp.concatenate([x, h_prev], axis=1)          # [B, E_PAD + H] f32
        gates = jnp.dot(xh.astype(jnp.bfloat16), w_ref[l],
                        preferred_element_type=jnp.float32) + b_ref[l]  # [B, 4H]
        # full-vreg activations, then lane slices (PyTorch gate order i, f, g, o)
        sig = jax.nn.sigmoid(gates)
        tnh = jnp.tanh(gates)
        i_g = sig[:, 0 * hid:1 * hid]
        f_g = sig[:, 1 * hid:2 * hid]
        g_g = tnh[:, 2 * hid:3 * hid]
        o_g = sig[:, 3 * hid:4 * hid]
        c_new = f_g * c_prev + i_g * g_g
        h_new = o_g * jnp.tanh(c_new)
        h_ref[l] = h_new
        c_ref[l] = c_new
        x = h_new
    return x


# --------------------------------------------------------------------------
# encoder kernel: grid over src timesteps, h/c carried in the output blocks
# --------------------------------------------------------------------------
def make_encoder_kernel(n_layers, hid):
    def kernel(src_oh_ref, emb_ref, w_ref, b_ref, h_ref, c_ref):
        s = pl.program_id(0)

        @pl.when(s == 0)
        def _init():
            h_ref[...] = jnp.zeros_like(h_ref)
            c_ref[...] = jnp.zeros_like(c_ref)

        # embedding lookup as one-hot @ table (exact; MXU-friendly)
        x = jnp.dot(src_oh_ref[0], emb_ref[...],
                    preferred_element_type=jnp.float32)    # [B, E_PAD] f32
        _lstm_stack_step(x, h_ref, c_ref, w_ref, b_ref, n_layers, hid)

    return kernel


# --------------------------------------------------------------------------
# decoder kernel: grid over trg timesteps, full decode loop in one call
# --------------------------------------------------------------------------
def make_decoder_kernel(n_layers, hid, vocab, v_pad, batch):
    def kernel(trg_oh_ref, tf_ref, h0_ref, c0_ref, emb_ref, w_ref, b_ref,
               wfc_ref, bfc_ref, out_ref, h_scr, c_scr, inp_scr):
        s = pl.program_id(0)
        t = s + 1                      # outputs[0] stays zero, as in the module

        @pl.when(s == 0)
        def _init():
            h_scr[...] = h0_ref[...]   # encoder hidden
            c_scr[...] = c0_ref[...]   # encoder cell
            inp_scr[...] = trg_oh_ref[0]   # input = trg[0]

        # embedding lookup (one-hot @ table, exact)
        x = jnp.dot(inp_scr[...], emb_ref[...],
                    preferred_element_type=jnp.float32)    # [B, E_PAD] f32
        top = _lstm_stack_step(x, h_scr, c_scr, w_ref, b_ref, n_layers, hid)

        # fc_out on the top-layer output, padded to a lane-dense [B, 128] slab
        logits = jnp.dot(top.astype(jnp.bfloat16), wfc_ref[...],
                         preferred_element_type=jnp.float32) + bfc_ref[...]
        out_ref[0] = logits                                 # unmasked vst

        # ---- next-token selection: teacher forcing vs greedy argmax ----
        lane = jax.lax.broadcasted_iota(
            jnp.int32, (batch, v_pad), 1).astype(jnp.float32)
        masked = jnp.where(lane < float(vocab), logits, -jnp.inf)
        row_max = jnp.max(masked, axis=1, keepdims=True)
        cand = jnp.where(masked == row_max, lane, float(v_pad))
        top1 = jnp.min(cand, axis=1, keepdims=True)         # first-max tiebreak
        top1_oh = (lane == top1).astype(jnp.float32)         # [B, V_PAD]

        tfv = tf_ref[t]                                      # [1, V_PAD] f32
        nxt = tfv * trg_oh_ref[t].astype(jnp.float32) + (1.0 - tfv) * top1_oh
        inp_scr[...] = nxt.astype(inp_scr.dtype)

    return kernel


# --------------------------------------------------------------------------
# parameter packing (PyTorch-shaped params -> fused / padded kernel layout)
# --------------------------------------------------------------------------
def _pack_embedding(emb):
    """[vocab, EMB_DIM] -> zero-padded [V_PAD, E_PAD] bf16."""
    out = jnp.zeros((V_PAD, E_PAD), jnp.float32)
    out = out.at[:emb.shape[0], :emb.shape[1]].set(emb)
    return out.astype(jnp.bfloat16)


def _pack_lstm(layer_params):
    """layer_params: [(wih [4H,in], whh [4H,H], bih [4H], bhh [4H])] per layer.
    Returns fused weights [L, E_PAD+H, 4H] bf16 and biases [L, 1, 4H] f32."""
    ws, bs = [], []
    for wih, whh, bih, bhh in layer_params:
        in_dim = wih.shape[1]
        wih_t = jnp.pad(wih.T, ((0, E_PAD - in_dim), (0, 0)))   # [E_PAD, 4H]
        ws.append(jnp.concatenate([wih_t, whh.T], axis=0))      # [E_PAD+H, 4H]
        bs.append((bih + bhh).reshape(1, -1))                   # [1, 4H]
    return jnp.stack(ws).astype(jnp.bfloat16), jnp.stack(bs)


def init_params(key):
    ks = iter(jax.random.split(key, 24))

    def nrm(shape, scale=0.1):
        return jax.random.normal(next(ks), shape, jnp.float32) * scale

    p = {}
    # ---- encoder ----
    enc_emb = nrm((INPUT_DIM, EMB_DIM))
    enc_layers = []
    for l in range(N_LAYERS):
        in_dim = EMB_DIM if l == 0 else HID_DIM
        enc_layers.append((nrm((4 * HID_DIM, in_dim)), nrm((4 * HID_DIM, HID_DIM)),
                           nrm((4 * HID_DIM,)), nrm((4 * HID_DIM,))))
    p["enc_emb"] = _pack_embedding(enc_emb)
    p["enc_w"], p["enc_b"] = _pack_lstm(enc_layers)
    # ---- decoder ----
    dec_emb = nrm((OUTPUT_DIM, EMB_DIM))
    dec_layers = []
    for l in range(N_LAYERS):
        in_dim = EMB_DIM if l == 0 else HID_DIM
        dec_layers.append((nrm((4 * HID_DIM, in_dim)), nrm((4 * HID_DIM, HID_DIM)),
                           nrm((4 * HID_DIM,)), nrm((4 * HID_DIM,))))
    p["dec_emb"] = _pack_embedding(dec_emb)
    p["dec_w"], p["dec_b"] = _pack_lstm(dec_layers)
    # fc_out: PyTorch [V, H]; stored transposed + zero-padded to V_PAD columns
    wfc = nrm((OUTPUT_DIM, HID_DIM))
    bfc = nrm((OUTPUT_DIM,))
    p["wfc"] = (jnp.zeros((HID_DIM, V_PAD), jnp.float32)
                .at[:, :OUTPUT_DIM].set(wfc.T).astype(jnp.bfloat16))
    p["bfc"] = jnp.zeros((1, V_PAD), jnp.float32).at[:, :OUTPUT_DIM].set(bfc)
    return p


# --------------------------------------------------------------------------
# wrappers
# --------------------------------------------------------------------------
def _encode(src, params):
    S, B = src.shape
    src_oh = jax.nn.one_hot(src, V_PAD, dtype=jnp.bfloat16)        # [S, B, V_PAD]
    const3 = lambda s: (0, 0, 0)
    const2 = lambda s: (0, 0)
    h, c = pl.pallas_call(
        make_encoder_kernel(N_LAYERS, HID_DIM),
        grid=(S,),
        in_specs=[
            pl.BlockSpec((1, B, V_PAD), lambda s: (s, 0, 0)),
            pl.BlockSpec((V_PAD, E_PAD), const2),
            pl.BlockSpec((N_LAYERS, E_PAD + HID_DIM, 4 * HID_DIM), const3),
            pl.BlockSpec((N_LAYERS, 1, 4 * HID_DIM), const3),
        ],
        out_specs=(pl.BlockSpec((N_LAYERS, B, HID_DIM), const3),
                   pl.BlockSpec((N_LAYERS, B, HID_DIM), const3)),
        out_shape=(jax.ShapeDtypeStruct((N_LAYERS, B, HID_DIM), jnp.float32),
                   jax.ShapeDtypeStruct((N_LAYERS, B, HID_DIM), jnp.float32)),
        compiler_params=pltpu.CompilerParams(
            dimension_semantics=("arbitrary",)),    # recurrent carry: sequential
    )(src_oh, params["enc_emb"], params["enc_w"], params["enc_b"])
    return h, c


def _decode(trg, h0, c0, tf_flags, params):
    T, B = trg.shape
    trg_oh = jax.nn.one_hot(trg, V_PAD, dtype=jnp.bfloat16)        # [T, B, V_PAD]
    tf_arr = jnp.broadcast_to(
        tf_flags.astype(jnp.float32).reshape(T, 1, 1), (T, 1, V_PAD))
    const3 = lambda s: (0, 0, 0)
    const2 = lambda s: (0, 0)
    logits = pl.pallas_call(
        make_decoder_kernel(N_LAYERS, HID_DIM, OUTPUT_DIM, V_PAD, B),
        grid=(T - 1,),
        in_specs=[
            pl.BlockSpec((T, B, V_PAD), const3),                   # trg one-hot
            pl.BlockSpec((T, 1, V_PAD), const3),                   # tf flags
            pl.BlockSpec((N_LAYERS, B, HID_DIM), const3),          # h0
            pl.BlockSpec((N_LAYERS, B, HID_DIM), const3),          # c0
            pl.BlockSpec((V_PAD, E_PAD), const2),                  # dec embedding
            pl.BlockSpec((N_LAYERS, E_PAD + HID_DIM, 4 * HID_DIM), const3),
            pl.BlockSpec((N_LAYERS, 1, 4 * HID_DIM), const3),
            pl.BlockSpec((HID_DIM, V_PAD), const2),                # fc_out weight
            pl.BlockSpec((1, V_PAD), const2),                      # fc_out bias
        ],
        out_specs=pl.BlockSpec((1, B, V_PAD), lambda s: (s, 0, 0)),
        out_shape=jax.ShapeDtypeStruct((T - 1, B, V_PAD), jnp.float32),
        scratch_shapes=[
            pltpu.VMEM((N_LAYERS, B, HID_DIM), jnp.float32),       # h carry
            pltpu.VMEM((N_LAYERS, B, HID_DIM), jnp.float32),       # c carry
            pltpu.VMEM((B, V_PAD), jnp.bfloat16),                  # input one-hot
        ],
        compiler_params=pltpu.CompilerParams(
            dimension_semantics=("arbitrary",)),
    )(trg_oh, tf_arr, h0, c0, params["dec_emb"], params["dec_w"],
      params["dec_b"], params["wfc"], params["bfc"])
    return logits


@jax.jit
def seq2seq_forward(src, trg, tf_flags, params):
    """Pallas equivalent of Seq2Seq.forward(src, trg) in eval mode."""
    T, B = trg.shape
    h, c = _encode(src, params)
    logits = _decode(trg, h, c, tf_flags, params)
    # outputs[0] is left as zeros, exactly as in the PyTorch module
    return jnp.concatenate(
        [jnp.zeros((1, B, OUTPUT_DIM), jnp.float32),
         logits[:, :, :OUTPUT_DIM]], axis=0)


# --------------------------------------------------------------------------
# pure-JAX reference (mirrors the kernel numerics: bf16 matmul inputs,
# f32 accumulation and f32 elementwise math)
# --------------------------------------------------------------------------
def seq2seq_forward_ref(src, trg, tf_flags, params):
    S, B = src.shape
    T, _ = trg.shape
    H = HID_DIM

    def lstm_step(x, h, c, w, b):
        hs, cs = [], []
        for l in range(N_LAYERS):
            xh = jnp.concatenate([x, h[l]], axis=1)
            gates = jnp.dot(xh.astype(jnp.bfloat16), w[l],
                            preferred_element_type=jnp.float32) + b[l]
            sig = jax.nn.sigmoid(gates)
            tnh = jnp.tanh(gates)
            i_g = sig[:, :H]
            f_g = sig[:, H:2 * H]
            g_g = tnh[:, 2 * H:3 * H]
            o_g = sig[:, 3 * H:]
            c_new = f_g * c[l] + i_g * g_g
            h_new = o_g * jnp.tanh(c_new)
            hs.append(h_new)
            cs.append(c_new)
            x = h_new
        return x, jnp.stack(hs), jnp.stack(cs)

    def embed(onehot, table):
        return jnp.dot(onehot.astype(jnp.bfloat16), table,
                       preferred_element_type=jnp.float32)

    # encoder
    src_oh = jax.nn.one_hot(src, V_PAD, dtype=jnp.bfloat16)
    h = jnp.zeros((N_LAYERS, B, H), jnp.float32)
    c = jnp.zeros((N_LAYERS, B, H), jnp.float32)
    for s in range(S):
        x = embed(src_oh[s], params["enc_emb"])
        _, h, c = lstm_step(x, h, c, params["enc_w"], params["enc_b"])

    # decoder loop (teacher forcing vs greedy)
    trg_oh = jax.nn.one_hot(trg, V_PAD, dtype=jnp.bfloat16)
    outputs = [jnp.zeros((B, OUTPUT_DIM), jnp.float32)]
    inp = trg_oh[0]
    for t in range(1, T):
        x = embed(inp, params["dec_emb"])
        top, h, c = lstm_step(x, h, c, params["dec_w"], params["dec_b"])
        logits = jnp.dot(top.astype(jnp.bfloat16), params["wfc"],
                         preferred_element_type=jnp.float32) + params["bfc"]
        outputs.append(logits[:, :OUTPUT_DIM])
        top1 = jnp.argmax(logits[:, :OUTPUT_DIM], axis=1)
        top1_oh = jax.nn.one_hot(top1, V_PAD, dtype=jnp.float32)
        tfv = tf_flags[t].astype(jnp.float32)
        inp = (tfv * trg_oh[t].astype(jnp.float32)
               + (1.0 - tfv) * top1_oh).astype(jnp.bfloat16)
    return jnp.stack(outputs, axis=0)


if __name__ == "__main__":
    key = jax.random.PRNGKey(0)
    k_param, k_src, k_trg, k_tf = jax.random.split(key, 4)

    params = init_params(k_param)
    src = jax.random.randint(k_src, (SRC_LEN, BATCH), 0, INPUT_DIM, jnp.int32)
    trg = jax.random.randint(k_trg, (TRG_LEN, BATCH), 0, OUTPUT_DIM, jnp.int32)
    # one Bernoulli(teacher_forcing_ratio = 0.5) draw per decode step (idx 0 unused)
    tf_flags = (jax.random.uniform(k_tf, (TRG_LEN,)) < 0.5).astype(jnp.int32)

    outputs = seq2seq_forward(src, trg, tf_flags, params)
    jax.block_until_ready(outputs)

    ref = seq2seq_forward_ref(src, trg, tf_flags, params)
    assert outputs.shape == (TRG_LEN, BATCH, OUTPUT_DIM)
    assert jnp.allclose(outputs, ref, atol=2e-3, rtol=2e-3), (
        float(jnp.max(jnp.abs(outputs - ref))))

    print("KERNEL_OK")
</pallas_src>

<mosaic_0001>
module attributes {stable_mosaic.version = 11 : i64} {
  func.func @kernel(%arg0: i32, %arg1: memref<1x8x128xbf16, #tpu.memory_space<vmem>>, %arg2: memref<128x32xbf16, #tpu.memory_space<vmem>>, %arg3: memref<2x64x128xbf16, #tpu.memory_space<vmem>>, %arg4: memref<2x1x128xf32, #tpu.memory_space<vmem>>, %arg5: memref<2x8x32xf32, #tpu.memory_space<vmem>>, %arg6: memref<2x8x32xf32, #tpu.memory_space<vmem>>) attributes {dimension_semantics = [#tpu.dimension_semantics<arbitrary>], iteration_bounds = array<i64: 10>, scalar_prefetch = 0 : i64, scratch_operands = 0 : i64, tpu.core_type = #tpu.core_type<tc>, window_params = [{transform_indices = @transform_0, window_bounds = array<i64: 1, 8, 128>}, {pipeline_mode = #tpu.pipeline_mode<synchronous>, transform_indices = @transform_1, window_bounds = array<i64: 128, 32>}, {pipeline_mode = #tpu.pipeline_mode<synchronous>, transform_indices = @transform_2, window_bounds = array<i64: 2, 64, 128>}, {pipeline_mode = #tpu.pipeline_mode<synchronous>, transform_indices = @transform_3, window_bounds = array<i64: 2, 1, 128>}, {pipeline_mode = #tpu.pipeline_mode<synchronous>, transform_indices = @transform_4, window_bounds = array<i64: 2, 8, 32>}, {pipeline_mode = #tpu.pipeline_mode<synchronous>, transform_indices = @transform_5, window_bounds = array<i64: 2, 8, 32>}]} {
    %c0_i32 = arith.constant 0 : i32
    %0 = arith.cmpi eq, %arg0, %c0_i32 : i32
    %1 = arith.extui %0 : i1 to i32
    %c0_i32_0 = arith.constant 0 : i32
    %2 = arith.cmpi ne, %1, %c0_i32_0 : i32
    scf.if %2 {
      %cst_44 = arith.constant 0.000000e+00 : f32
      %75 = vector.broadcast %cst_44 : f32 to vector<2x8x32xf32>
      %c0_45 = arith.constant 0 : index
      %c0_46 = arith.constant 0 : index
      %c0_47 = arith.constant 0 : index
      %76 = vector.load %arg5[%c0_45, %c0_46, %c0_47] : memref<2x8x32xf32, #tpu.memory_space<vmem>>, vector<2x8x32xf32>
      tpu.vector_store %arg5[%c0_45, %c0_46, %c0_47], %75 {strides = array<i32>} : memref<2x8x32xf32, #tpu.memory_space<vmem>>, vector<2x8x32xf32>,
      %cst_48 = arith.constant 0.000000e+00 : f32
      %77 = vector.broadcast %cst_48 : f32 to vector<2x8x32xf32>
      %c0_49 = arith.constant 0 : index
      %c0_50 = arith.constant 0 : index
      %c0_51 = arith.constant 0 : index
      %78 = vector.load %arg6[%c0_49, %c0_50, %c0_51] : memref<2x8x32xf32, #tpu.memory_space<vmem>>, vector<2x8x32xf32>
      tpu.vector_store %arg6[%c0_49, %c0_50, %c0_51], %77 {strides = array<i32>} : memref<2x8x32xf32, #tpu.memory_space<vmem>>, vector<2x8x32xf32>,
    } else {
    }
    %c0 = arith.constant 0 : index
    %c0_1 = arith.constant 0 : index
    %c0_2 = arith.constant 0 : index
    %3 = vector.load %arg1[%c0, %c0_1, %c0_2] : memref<1x8x128xbf16, #tpu.memory_space<vmem>>, vector<1x8x128xbf16>
    %4 = vector.shape_cast %3 : vector<1x8x128xbf16> to vector<8x128xbf16>
    %c0_3 = arith.constant 0 : index
    %c0_4 = arith.constant 0 : index
    %5 = vector.load %arg2[%c0_3, %c0_4] : memref<128x32xbf16, #tpu.memory_space<vmem>>, vector<128x32xbf16>
    %cst = arith.constant dense<0.000000e+00> : vector<8x32xf32>
    %6 = tpu.matmul %4, %5, %cst {dimension_numbers = #tpu.dot_dimension_numbers<[1], [0], [0], [1], [0, 0, 1, 1], [], []>} : vector<8x128xbf16>, vector<128x32xbf16>, vector<8x32xf32> -> vector<8x32xf32>
    %c0_5 = arith.constant 0 : index
    %c0_6 = arith.constant 0 : index
    %c0_7 = arith.constant 0 : index
    %7 = vector.load %arg5[%c0_5, %c0_6, %c0_7] : memref<2x8x32xf32, #tpu.memory_space<vmem>>, vector<1x8x32xf32>
    %8 = vector.shape_cast %7 : vector<1x8x32xf32> to vector<8x32xf32>
    %c0_8 = arith.constant 0 : index
    %c0_9 = arith.constant 0 : index
    %c0_10 = arith.constant 0 : index
    %9 = vector.load %arg6[%c0_8, %c0_9, %c0_10] : memref<2x8x32xf32, #tpu.memory_space<vmem>>, vector<1x8x32xf32>
    %10 = vector.shape_cast %9 : vector<1x8x32xf32> to vector<8x32xf32>
    %11 = tpu.concatenate %6, %8 in 1 : vector<8x32xf32>, vector<8x32xf32> -> vector<8x64xf32>
    %12 = arith.truncf %11 : vector<8x64xf32> to vector<8x64xbf16>
    %c0_11 = arith.constant 0 : index
    %c0_12 = arith.constant 0 : index
    %c0_13 = arith.constant 0 : index
    %13 = vector.load %arg3[%c0_11, %c0_12, %c0_13] : memref<2x64x128xbf16, #tpu.memory_space<vmem>>, vector<1x64x128xbf16>
    %14 = vector.shape_cast %13 : vector<1x64x128xbf16> to vector<64x128xbf16>
    %cst_14 = arith.constant dense<0.000000e+00> : vector<8x128xf32>
    %15 = tpu.matmul %12, %14, %cst_14 {dimension_numbers = #tpu.dot_dimension_numbers<[1], [0], [0], [1], [0, 0, 1, 1], [], []>} : vector<8x64xbf16>, vector<64x128xbf16>, vector<8x128xf32> -> vector<8x128xf32>
    %c0_15 = arith.constant 0 : index
    %c0_16 = arith.constant 0 : index
    %c0_17 = arith.constant 0 : index
    %16 = vector.load %arg4[%c0_15, %c0_16, %c0_17] : memref<2x1x128xf32, #tpu.memory_space<vmem>>, vector<1x1x128xf32>
    %17 = vector.shape_cast %16 : vector<1x1x128xf32> to vector<1x128xf32>
    %18 = vector.broadcast %17 : vector<1x128xf32> to vector<8x128xf32>
    %19 = arith.addf %15, %18 : vector<8x128xf32>
    %20 = arith.negf %19 : vector<8x128xf32>
    %21 = math.exp %20 : vector<8x128xf32>
    %cst_18 = arith.constant 1.000000e+00 : f32
    %22 = vector.broadcast %cst_18 : f32 to vector<8x128xf32>
    %23 = arith.addf %22, %21 : vector<8x128xf32>
    %24 = arith.divf %22, %23 : vector<8x128xf32>
    %25 = math.tanh %19 : vector<8x128xf32>
    %26 = vector.extract_strided_slice %24 {offsets = [0, 0], sizes = [8, 32], strides = [1, 1]} : vector<8x128xf32> to vector<8x32xf32>
    %27 = vector.extract_strided_slice %24 {offsets = [0, 32], sizes = [8, 32], strides = [1, 1]} : vector<8x128xf32> to vector<8x32xf32>
    %28 = vector.extract_strided_slice %25 {offsets = [0, 64], sizes = [8, 32], strides = [1, 1]} : vector<8x128xf32> to vector<8x32xf32>
    %29 = vector.extract_strided_slice %24 {offsets = [0, 96], sizes = [8, 32], strides = [1, 1]} : vector<8x128xf32> to vector<8x32xf32>
    %30 = arith.mulf %27, %10 : vector<8x32xf32>
    %31 = arith.mulf %26, %28 : vector<8x32xf32>
    %32 = arith.addf %30, %31 : vector<8x32xf32>
    %33 = math.tanh %32 : vector<8x32xf32>
    %34 = arith.mulf %29, %33 : vector<8x32xf32>
    %c0_19 = arith.constant 0 : index
    %c0_20 = arith.constant 0 : index
    %c0_21 = arith.constant 0 : index
    %35 = vector.load %arg5[%c0_19, %c0_20, %c0_21] : memref<2x8x32xf32, #tpu.memory_space<vmem>>, vector<1x8x32xf32>
    %36 = vector.shape_cast %35 : vector<1x8x32xf32> to vector<8x32xf32>
    %37 = vector.shape_cast %34 : vector<8x32xf32> to vector<1x8x32xf32>
    tpu.vector_store %arg5[%c0_19, %c0_20, %c0_21], %37 {strides = array<i32>} : memref<2x8x32xf32, #tpu.memory_space<vmem>>, vector<1x8x32xf32>,
    %c0_22 = arith.constant 0 : index
    %c0_23 = arith.constant 0 : index
    %c0_24 = arith.constant 0 : index
    %38 = vector.load %arg6[%c0_22, %c0_23, %c0_24] : memref<2x8x32xf32, #tpu.memory_space<vmem>>, vector<1x8x32xf32>
    %39 = vector.shape_cast %38 : vector<1x8x32xf32> to vector<8x32xf32>
    %40 = vector.shape_cast %32 : vector<8x32xf32> to vector<1x8x32xf32>
    tpu.vector_store %arg6[%c0_22, %c0_23, %c0_24], %40 {strides = array<i32>} : memref<2x8x32xf32, #tpu.memory_space<vmem>>, vector<1x8x32xf32>,
    %c1 = arith.constant 1 : index
    %c0_25 = arith.constant 0 : index
    %c0_26 = arith.constant 0 : index
    %41 = vector.load %arg5[%c1, %c0_25, %c0_26] : memref<2x8x32xf32, #tpu.memory_space<vmem>>, vector<1x8x32xf32>
    %42 = vector.shape_cast %41 : vector<1x8x32xf32> to vector<8x32xf32>
    %c1_27 = arith.constant 1 : index
    %c0_28 = arith.constant 0 : index
    %c0_29 = arith.constant 0 : index
    %43 = vector.load %arg6[%c1_27, %c0_28, %c0_29] : memref<2x8x32xf32, #tpu.memory_space<vmem>>, vector<1x8x32xf32>
    %44 = vector.shape_cast %43 : vector<1x8x32xf32> to vector<8x32xf32>
    %45 = tpu.concatenate %34, %42 in 1 : vector<8x32xf32>, vector<8x32xf32> -> vector<8x64xf32>
    %46 = arith.truncf %45 : vector<8x64xf32> to vector<8x64xbf16>
    %c1_30 = arith.constant 1 : index
    %c0_31 = arith.constant 0 : index
    %c0_32 = arith.constant 0 : index
    %47 = vector.load %arg3[%c1_30, %c0_31, %c0_32] : memref<2x64x128xbf16, #tpu.memory_space<vmem>>, vector<1x64x128xbf16>
    %48 = vector.shape_cast %47 : vector<1x64x128xbf16> to vector<64x128xbf16>
    %cst_33 = arith.constant dense<0.000000e+00> : vector<8x128xf32>
    %49 = tpu.matmul %46, %48, %cst_33 {dimension_numbers = #tpu.dot_dimension_numbers<[1], [0], [0], [1], [0, 0, 1, 1], [], []>} : vector<8x64xbf16>, vector<64x128xbf16>, vector<8x128xf32> -> vector<8x128xf32>
    %c1_34 = arith.constant 1 : index
    %c0_35 = arith.constant 0 : index
    %c0_36 = arith.constant 0 : index
    %50 = vector.load %arg4[%c1_34, %c0_35, %c0_36] : memref<2x1x128xf32, #tpu.memory_space<vmem>>, vector<1x1x128xf32>
    %51 = vector.shape_cast %50 : vector<1x1x128xf32> to vector<1x128xf32>
    %52 = vector.broadcast %51 : vector<1x128xf32> to vector<8x128xf32>
    %53 = arith.addf %49, %52 : vector<8x128xf32>
    %54 = arith.negf %53 : vector<8x128xf32>
    %55 = math.exp %54 : vector<8x128xf32>
    %cst_37 = arith.constant 1.000000e+00 : f32
    %56 = vector.broadcast %cst_37 : f32 to vector<8x128xf32>
    %57 = arith.addf %56, %55 : vector<8x128xf32>
    %58 = arith.divf %56, %57 : vector<8x128xf32>
    %59 = math.tanh %53 : vector<8x128xf32>
    %60 = vector.extract_strided_slice %58 {offsets = [0, 0], sizes = [8, 32], strides = [1, 1]} : vector<8x128xf32> to vector<8x32xf32>
    %61 = vector.extract_strided_slice %58 {offsets = [0, 32], sizes = [8, 32], strides = [1, 1]} : vector<8x128xf32> to vector<8x32xf32>
    %62 = vector.extract_strided_slice %59 {offsets = [0, 64], sizes = [8, 32], strides = [1, 1]} : vector<8x128xf32> to vector<8x32xf32>
    %63 = vector.extract_strided_slice %58 {offsets = [0, 96], sizes = [8, 32], strides = [1, 1]} : vector<8x128xf32> to vector<8x32xf32>
    %64 = arith.mulf %61, %44 : vector<8x32xf32>
    %65 = arith.mulf %60, %62 : vector<8x32xf32>
    %66 = arith.addf %64, %65 : vector<8x32xf32>
    %67 = math.tanh %66 : vector<8x32xf32>
    %68 = arith.mulf %63, %67 : vector<8x32xf32>
    %c1_38 = arith.constant 1 : index
    %c0_39 = arith.constant 0 : index
    %c0_40 = arith.constant 0 : index
    %69 = vector.load %arg5[%c1_38, %c0_39, %c0_40] : memref<2x8x32xf32, #tpu.memory_space<vmem>>, vector<1x8x32xf32>
    %70 = vector.shape_cast %69 : vector<1x8x32xf32> to vector<8x32xf32>
    %71 = vector.shape_cast %68 : vector<8x32xf32> to vector<1x8x32xf32>
    tpu.vector_store %arg5[%c1_38, %c0_39, %c0_40], %71 {strides = array<i32>} : memref<2x8x32xf32, #tpu.memory_space<vmem>>, vector<1x8x32xf32>,
    %c1_41 = arith.constant 1 : index
    %c0_42 = arith.constant 0 : index
    %c0_43 = arith.constant 0 : index
    %72 = vector.load %arg6[%c1_41, %c0_42, %c0_43] : memref<2x8x32xf32, #tpu.memory_space<vmem>>, vector<1x8x32xf32>
    %73 = vector.shape_cast %72 : vector<1x8x32xf32> to vector<8x32xf32>
    %74 = vector.shape_cast %66 : vector<8x32xf32> to vector<1x8x32xf32>
    tpu.vector_store %arg6[%c1_41, %c0_42, %c0_43], %74 {strides = array<i32>} : memref<2x8x32xf32, #tpu.memory_space<vmem>>, vector<1x8x32xf32>,
    return
  }
  func.func @transform_0(%arg0: i32) -> (i32, i32, i32) {
    %c0_i32 = arith.constant 0 : i32
    %c0_i32_0 = arith.constant 0 : i32
    %c0_i32_1 = arith.constant 0 : i32
    return %arg0, %c0_i32, %c0_i32_0 : i32, i32, i32
  }
  func.func @transform_1(%arg0: i32) -> (i32, i32) {
    %c0_i32 = arith.constant 0 : i32
    %c0_i32_0 = arith.constant 0 : i32
    %c0_i32_1 = arith.constant 0 : i32
    return %c0_i32, %c0_i32_0 : i32, i32
  }
  func.func @transform_2(%arg0: i32) -> (i32, i32, i32) {
    %c0_i32 = arith.constant 0 : i32
    %c0_i32_0 = arith.constant 0 : i32
    %c0_i32_1 = arith.constant 0 : i32
    %c0_i32_2 = arith.constant 0 : i32
    return %c0_i32, %c0_i32_0, %c0_i32_1 : i32, i32, i32
  }
  func.func @transform_3(%arg0: i32) -> (i32, i32, i32) {
    %c0_i32 = arith.constant 0 : i32
    %c0_i32_0 = arith.constant 0 : i32
    %c0_i32_1 = arith.constant 0 : i32
    %c0_i32_2 = arith.constant 0 : i32
    return %c0_i32, %c0_i32_0, %c0_i32_1 : i32, i32, i32
  }
  func.func @transform_4(%arg0: i32) -> (i32, i32, i32) {
    %c0_i32 = arith.constant 0 : i32
    %c0_i32_0 = arith.constant 0 : i32
    %c0_i32_1 = arith.constant 0 : i32
    %c0_i32_2 = arith.constant 0 : i32
    return %c0_i32, %c0_i32_0, %c0_i32_1 : i32, i32, i32
  }
  func.func @transform_5(%arg0: i32) -> (i32, i32, i32) {
    %c0_i32 = arith.constant 0 : i32
    %c0_i32_0 = arith.constant 0 : i32
    %c0_i32_1 = arith.constant 0 : i32
    %c0_i32_2 = arith.constant 0 : i32
    return %c0_i32, %c0_i32_0, %c0_i32_1 : i32, i32, i32
  }
}

module attributes {stable_mosaic.version = 11 : i64} {
  func.func @kernel(%arg0: i32, %arg1: memref<8x8x128xbf16, #tpu.memory_space<vmem>>, %arg2: memref<8x1x128xf32, #tpu.memory_space<vmem>>, %arg3: memref<2x8x32xf32, #tpu.memory_space<vmem>>, %arg4: memref<2x8x32xf32, #tpu.memory_space<vmem>>, %arg5: memref<128x32xbf16, #tpu.memory_space<vmem>>, %arg6: memref<2x64x128xbf16, #tpu.memory_space<vmem>>, %arg7: memref<2x1x128xf32, #tpu.memory_space<vmem>>, %arg8: memref<32x128xbf16, #tpu.memory_space<vmem>>, %arg9: memref<1x128xf32, #tpu.memory_space<vmem>>, %arg10: memref<1x8x128xf32, #tpu.memory_space<vmem>>, %arg11: memref<2x8x32xf32, #tpu.memory_space<vmem>>, %arg12: memref<2x8x32xf32, #tpu.memory_space<vmem>>, %arg13: memref<8x128xbf16, #tpu.memory_space<vmem>>) attributes {dimension_semantics = [#tpu.dimension_semantics<arbitrary>], iteration_bounds = array<i64: 7>, scalar_prefetch = 0 : i64, scratch_operands = 3 : i64, tpu.core_type = #tpu.core_type<tc>, window_params = [{pipeline_mode = #tpu.pipeline_mode<synchronous>, transform_indices = @transform_0, window_bounds = array<i64: 8, 8, 128>}, {pipeline_mode = #tpu.pipeline_mode<synchronous>, transform_indices = @transform_1, window_bounds = array<i64: 8, 1, 128>}, {pipeline_mode = #tpu.pipeline_mode<synchronous>, transform_indices = @transform_2, window_bounds = array<i64: 2, 8, 32>}, {pipeline_mode = #tpu.pipeline_mode<synchronous>, transform_indices = @transform_3, window_bounds = array<i64: 2, 8, 32>}, {pipeline_mode = #tpu.pipeline_mode<synchronous>, transform_indices = @transform_4, window_bounds = array<i64: 128, 32>}, {pipeline_mode = #tpu.pipeline_mode<synchronous>, transform_indices = @transform_5, window_bounds = array<i64: 2, 64, 128>}, {pipeline_mode = #tpu.pipeline_mode<synchronous>, transform_indices = @transform_6, window_bounds = array<i64: 2, 1, 128>}, {pipeline_mode = #tpu.pipeline_mode<synchronous>, transform_indices = @transform_7, window_bounds = array<i64: 32, 128>}, {pipeline_mode = #tpu.pipeline_mode<synchronous>, transform_indices = @transform_8, window_bounds = array<i64: 1, 128>}, {transform_indices = @transform_9, window_bounds = array<i64: 1, 8, 128>}]} {
    %c1_i32 = arith.constant 1 : i32
    %0 = arith.addi %arg0, %c1_i32 : i32
    %c0_i32 = arith.constant 0 : i32
    %1 = arith.cmpi eq, %arg0, %c0_i32 : i32
    %2 = arith.extui %1 : i1 to i32
    %c0_i32_0 = arith.constant 0 : i32
    %3 = arith.cmpi ne, %2, %c0_i32_0 : i32
    scf.if %3 {
      %c0_63 = arith.constant 0 : index
      %c0_64 = arith.constant 0 : index
      %c0_65 = arith.constant 0 : index
      %118 = vector.load %arg3[%c0_63, %c0_64, %c0_65] : memref<2x8x32xf32, #tpu.memory_space<vmem>>, vector<2x8x32xf32>
      %c0_66 = arith.constant 0 : index
      %c0_67 = arith.constant 0 : index
      %c0_68 = arith.constant 0 : index
      %119 = vector.load %arg11[%c0_66, %c0_67, %c0_68] : memref<2x8x32xf32, #tpu.memory_space<vmem>>, vector<2x8x32xf32>
      tpu.vector_store %arg11[%c0_66, %c0_67, %c0_68], %118 {strides = array<i32>} : memref<2x8x32xf32, #tpu.memory_space<vmem>>, vector<2x8x32xf32>,
      %c0_69 = arith.constant 0 : index
      %c0_70 = arith.constant 0 : index
      %c0_71 = arith.constant 0 : index
      %120 = vector.load %arg4[%c0_69, %c0_70, %c0_71] : memref<2x8x32xf32, #tpu.memory_space<vmem>>, vector<2x8x32xf32>
      %c0_72 = arith.constant 0 : index
      %c0_73 = arith.constant 0 : index
      %c0_74 = arith.constant 0 : index
      %121 = vector.load %arg12[%c0_72, %c0_73, %c0_74] : memref<2x8x32xf32, #tpu.memory_space<vmem>>, vector<2x8x32xf32>
      tpu.vector_store %arg12[%c0_72, %c0_73, %c0_74], %120 {strides = array<i32>} : memref<2x8x32xf32, #tpu.memory_space<vmem>>, vector<2x8x32xf32>,
      %c0_75 = arith.constant 0 : index
      %c0_76 = arith.constant 0 : index
      %c0_77 = arith.constant 0 : index
      %122 = vector.load %arg1[%c0_75, %c0_76, %c0_77] : memref<8x8x128xbf16, #tpu.memory_space<vmem>>, vector<1x8x128xbf16>
      %123 = vector.shape_cast %122 : vector<1x8x128xbf16> to vector<8x128xbf16>
      %c0_78 = arith.constant 0 : index
      %c0_79 = arith.constant 0 : index
      %124 = vector.load %arg13[%c0_78, %c0_79] : memref<8x128xbf16, #tpu.memory_space<vmem>>, vector<8x128xbf16>
      tpu.vector_store %arg13[%c0_78, %c0_79], %123 {strides = array<i32>} : memref<8x128xbf16, #tpu.memory_space<vmem>>, vector<8x128xbf16>,
    } else {
    }
    %c0 = arith.constant 0 : index
    %c0_1 = arith.constant 0 : index
    %4 = vector.load %arg13[%c0, %c0_1] : memref<8x128xbf16, #tpu.memory_space<vmem>>, vector<8x128xbf16>
    %c0_2 = arith.constant 0 : index
    %c0_3 = arith.constant 0 : index
    %5 = vector.load %arg5[%c0_2, %c0_3] : memref<128x32xbf16, #tpu.memory_space<vmem>>, vector<128x32xbf16>
    %cst = arith.constant dense<0.000000e+00> : vector<8x32xf32>
    %6 = tpu.matmul %4, %5, %cst {dimension_numbers = #tpu.dot_dimension_numbers<[1], [0], [0], [1], [0, 0, 1, 1], [], []>} : vector<8x128xbf16>, vector<128x32xbf16>, vector<8x32xf32> -> vector<8x32xf32>
    %c0_4 = arith.constant 0 : index
    %c0_5 = arith.constant 0 : index
    %c0_6 = arith.constant 0 : index
    %7 = vector.load %arg11[%c0_4, %c0_5, %c0_6] : memref<2x8x32xf32, #tpu.memory_space<vmem>>, vector<1x8x32xf32>
    %8 = vector.shape_cast %7 : vector<1x8x32xf32> to vector<8x32xf32>
    %c0_7 = arith.constant 0 : index
    %c0_8 = arith.constant 0 : index
    %c0_9 = arith.constant 0 : index
    %9 = vector.load %arg12[%c0_7, %c0_8, %c0_9] : memref<2x8x32xf32, #tpu.memory_space<vmem>>, vector<1x8x32xf32>
    %10 = vector.shape_cast %9 : vector<1x8x32xf32> to vector<8x32xf32>
    %11 = tpu.concatenate %6, %8 in 1 : vector<8x32xf32>, vector<8x32xf32> -> vector<8x64xf32>
    %12 = arith.truncf %11 : vector<8x64xf32> to vector<8x64xbf16>
    %c0_10 = arith.constant 0 : index
    %c0_11 = arith.constant 0 : index
    %c0_12 = arith.constant 0 : index
    %13 = vector.load %arg6[%c0_10, %c0_11, %c0_12] : memref<2x64x128xbf16, #tpu.memory_space<vmem>>, vector<1x64x128xbf16>
    %14 = vector.shape_cast %13 : vector<1x64x128xbf16> to vector<64x128xbf16>
    %cst_13 = arith.constant dense<0.000000e+00> : vector<8x128xf32>
    %15 = tpu.matmul %12, %14, %cst_13 {dimension_numbers = #tpu.dot_dimension_numbers<[1], [0], [0], [1], [0, 0, 1, 1], [], []>} : vector<8x64xbf16>, vector<64x128xbf16>, vector<8x128xf32> -> vector<8x128xf32>
    %c0_14 = arith.constant 0 : index
    %c0_15 = arith.constant 0 : index
    %c0_16 = arith.constant 0 : index
    %16 = vector.load %arg7[%c0_14, %c0_15, %c0_16] : memref<2x1x128xf32, #tpu.memory_space<vmem>>, vector<1x1x128xf32>
    %17 = vector.shape_cast %16 : vector<1x1x128xf32> to vector<1x128xf32>
    %18 = vector.broadcast %17 : vector<1x128xf32> to vector<8x128xf32>
    %19 = arith.addf %15, %18 : vector<8x128xf32>
    %20 = arith.negf %19 : vector<8x128xf32>
    %21 = math.exp %20 : vector<8x128xf32>
    %cst_17 = arith.constant 1.000000e+00 : f32
    %22 = vector.broadcast %cst_17 : f32 to vector<8x128xf32>
    %23 = arith.addf %22, %21 : vector<8x128xf32>
    %24 = arith.divf %22, %23 : vector<8x128xf32>
    %25 = math.tanh %19 : vector<8x128xf32>
    %26 = vector.extract_strided_slice %24 {offsets = [0, 0], sizes = [8, 32], strides = [1, 1]} : vector<8x128xf32> to vector<8x32xf32>
    %27 = vector.extract_strided_slice %24 {offsets = [0, 32], sizes = [8, 32], strides = [1, 1]} : vector<8x128xf32> to vector<8x32xf32>
    %28 = vector.extract_strided_slice %25 {offsets = [0, 64], sizes = [8, 32], strides = [1, 1]} : vector<8x128xf32> to vector<8x32xf32>
    %29 = vector.extract_strided_slice %24 {offsets = [0, 96], sizes = [8, 32], strides = [1, 1]} : vector<8x128xf32> to vector<8x32xf32>
    %30 = arith.mulf %27, %10 : vector<8x32xf32>
    %31 = arith.mulf %26, %28 : vector<8x32xf32>
    %32 = arith.addf %30, %31 : vector<8x32xf32>
    %33 = math.tanh %32 : vector<8x32xf32>
    %34 = arith.mulf %29, %33 : vector<8x32xf32>
    %c0_18 = arith.constant 0 : index
    %c0_19 = arith.constant 0 : index
    %c0_20 = arith.constant 0 : index
    %35 = vector.load %arg11[%c0_18, %c0_19, %c0_20] : memref<2x8x32xf32, #tpu.memory_space<vmem>>, vector<1x8x32xf32>
    %36 = vector.shape_cast %35 : vector<1x8x32xf32> to vector<8x32xf32>
    %37 = vector.shape_cast %34 : vector<8x32xf32> to vector<1x8x32xf32>
    tpu.vector_store %arg11[%c0_18, %c0_19, %c0_20], %37 {strides = array<i32>} : memref<2x8x32xf32, #tpu.memory_space<vmem>>, vector<1x8x32xf32>,
    %c0_21 = arith.constant 0 : index
    %c0_22 = arith.constant 0 : index
    %c0_23 = arith.constant 0 : index
    %38 = vector.load %arg12[%c0_21, %c0_22, %c0_23] : memref<2x8x32xf32, #tpu.memory_space<vmem>>, vector<1x8x32xf32>
    %39 = vector.shape_cast %38 : vector<1x8x32xf32> to vector<8x32xf32>
    %40 = vector.shape_cast %32 : vector<8x32xf32> to vector<1x8x32xf32>
    tpu.vector_store %arg12[%c0_21, %c0_22, %c0_23], %40 {strides = array<i32>} : memref<2x8x32xf32, #tpu.memory_space<vmem>>, vector<1x8x32xf32>,
    %c1 = arith.constant 1 : index
    %c0_24 = arith.constant 0 : index
    %c0_25 = arith.constant 0 : index
    %41 = vector.load %arg11[%c1, %c0_24, %c0_25] : memref<2x8x32xf32, #tpu.memory_space<vmem>>, vector<1x8x32xf32>
    %42 = vector.shape_cast %41 : vector<1x8x32xf32> to vector<8x32xf32>
    %c1_26 = arith.constant 1 : index
    %c0_27 = arith.constant 0 : index
    %c0_28 = arith.constant 0 : index
    %43 = vector.load %arg12[%c1_26, %c0_27, %c0_28] : memref<2x8x32xf32, #tpu.memory_space<vmem>>, vector<1x8x32xf32>
    %44 = vector.shape_cast %43 : vector<1x8x32xf32> to vector<8x32xf32>
    %45 = tpu.concatenate %34, %42 in 1 : vector<8x32xf32>, vector<8x32xf32> -> vector<8x64xf32>
    %46 = arith.truncf %45 : vector<8x64xf32> to vector<8x64xbf16>
    %c1_29 = arith.constant 1 : index
    %c0_30 = arith.constant 0 : index
    %c0_31 = arith.constant 0 : index
    %47 = vector.load %arg6[%c1_29, %c0_30, %c0_31] : memref<2x64x128xbf16, #tpu.memory_space<vmem>>, vector<1x64x128xbf16>
    %48 = vector.shape_cast %47 : vector<1x64x128xbf16> to vector<64x128xbf16>
    %cst_32 = arith.constant dense<0.000000e+00> : vector<8x128xf32>
    %49 = tpu.matmul %46, %48, %cst_32 {dimension_numbers = #tpu.dot_dimension_numbers<[1], [0], [0], [1], [0, 0, 1, 1], [], []>} : vector<8x64xbf16>, vector<64x128xbf16>, vector<8x128xf32> -> vector<8x128xf32>
    %c1_33 = arith.constant 1 : index
    %c0_34 = arith.constant 0 : index
    %c0_35 = arith.constant 0 : index
    %50 = vector.load %arg7[%c1_33, %c0_34, %c0_35] : memref<2x1x128xf32, #tpu.memory_space<vmem>>, vector<1x1x128xf32>
    %51 = vector.shape_cast %50 : vector<1x1x128xf32> to vector<1x128xf32>
    %52 = vector.broadcast %51 : vector<1x128xf32> to vector<8x128xf32>
    %53 = arith.addf %49, %52 : vector<8x128xf32>
    %54 = arith.negf %53 : vector<8x128xf32>
    %55 = math.exp %54 : vector<8x128xf32>
    %cst_36 = arith.constant 1.000000e+00 : f32
    %56 = vector.broadcast %cst_36 : f32 to vector<8x128xf32>
    %57 = arith.addf %56, %55 : vector<8x128xf32>
    %58 = arith.divf %56, %57 : vector<8x128xf32>
    %59 = math.tanh %53 : vector<8x128xf32>
    %60 = vector.extract_strided_slice %58 {offsets = [0, 0], sizes = [8, 32], strides = [1, 1]} : vector<8x128xf32> to vector<8x32xf32>
    %61 = vector.extract_strided_slice %58 {offsets = [0, 32], sizes = [8, 32], strides = [1, 1]} : vector<8x128xf32> to vector<8x32xf32>
    %62 = vector.extract_strided_slice %59 {offsets = [0, 64], sizes = [8, 32], strides = [1, 1]} : vector<8x128xf32> to vector<8x32xf32>
    %63 = vector.extract_strided_slice %58 {offsets = [0, 96], sizes = [8, 32], strides = [1, 1]} : vector<8x128xf32> to vector<8x32xf32>
    %64 = arith.mulf %61, %44 : vector<8x32xf32>
    %65 = arith.mulf %60, %62 : vector<8x32xf32>
    %66 = arith.addf %64, %65 : vector<8x32xf32>
    %67 = math.tanh %66 : vector<8x32xf32>
    %68 = arith.mulf %63, %67 : vector<8x32xf32>
    %c1_37 = arith.constant 1 : index
    %c0_38 = arith.constant 0 : index
    %c0_39 = arith.constant 0 : index
    %69 = vector.load %arg11[%c1_37, %c0_38, %c0_39] : memref<2x8x32xf32, #tpu.memory_space<vmem>>, vector<1x8x32xf32>
    %70 = vector.shape_cast %69 : vector<1x8x32xf32> to vector<8x32xf32>
    %71 = vector.shape_cast %68 : vector<8x32xf32> to vector<1x8x32xf32>
    tpu.vector_store %arg11[%c1_37, %c0_38, %c0_39], %71 {strides = array<i32>} : memref<2x8x32xf32, #tpu.memory_space<vmem>>, vector<1x8x32xf32>,
    %c1_40 = arith.constant 1 : index
    %c0_41 = arith.constant 0 : index
    %c0_42 = arith.constant 0 : index
    %72 = vector.load %arg12[%c1_40, %c0_41, %c0_42] : memref<2x8x32xf32, #tpu.memory_space<vmem>>, vector<1x8x32xf32>
    %73 = vector.shape_cast %72 : vector<1x8x32xf32> to vector<8x32xf32>
    %74 = vector.shape_cast %66 : vector<8x32xf32> to vector<1x8x32xf32>
    tpu.vector_store %arg12[%c1_40, %c0_41, %c0_42], %74 {strides = array<i32>} : memref<2x8x32xf32, #tpu.memory_space<vmem>>, vector<1x8x32xf32>,
    %75 = arith.truncf %68 : vector<8x32xf32> to vector<8x32xbf16>
    %c0_43 = arith.constant 0 : index
    %c0_44 = arith.constant 0 : index
    %76 = vector.load %arg8[%c0_43, %c0_44] : memref<32x128xbf16, #tpu.memory_space<vmem>>, vector<32x128xbf16>
    %cst_45 = arith.constant dense<0.000000e+00> : vector<8x128xf32>
    %77 = tpu.matmul %75, %76, %cst_45 {dimension_numbers = #tpu.dot_dimension_numbers<[1], [0], [0], [1], [0, 0, 1, 1], [], []>} : vector<8x32xbf16>, vector<32x128xbf16>, vector<8x128xf32> -> vector<8x128xf32>
    %c0_46 = arith.constant 0 : index
    %c0_47 = arith.constant 0 : index
    %78 = vector.load %arg9[%c0_46, %c0_47] : memref<1x128xf32, #tpu.memory_space<vmem>>, vector<1x128xf32>
    %79 = vector.broadcast %78 : vector<1x128xf32> to vector<8x128xf32>
    %80 = arith.addf %77, %79 : vector<8x128xf32>
    %c0_48 = arith.constant 0 : index
    %c0_49 = arith.constant 0 : index
    %c0_50 = arith.constant 0 : index
    %81 = vector.load %arg10[%c0_48, %c0_49, %c0_50] : memref<1x8x128xf32, #tpu.memory_space<vmem>>, vector<1x8x128xf32>
    %82 = vector.shape_cast %81 : vector<1x8x128xf32> to vector<8x128xf32>
    %83 = vector.shape_cast %80 : vector<8x128xf32> to vector<1x8x128xf32>
    tpu.vector_store %arg10[%c0_48, %c0_49, %c0_50], %83 {strides = array<i32>} : memref<1x8x128xf32, #tpu.memory_space<vmem>>, vector<1x8x128xf32>,
    %84 = tpu.iota {dimensions = array<i32: 1>} : vector<8x128xi32>
    %85 = arith.sitofp %84 : vector<8x128xi32> to vector<8x128xf32>
    %cst_51 = arith.constant 3.200000e+01 : f32
    %86 = vector.broadcast %cst_51 : f32 to vector<8x128xf32>
    %87 = arith.cmpf olt, %85, %86 : vector<8x128xf32>
    %cst_52 = arith.constant 0xFF800000 : f32
    %88 = vector.broadcast %cst_52 : f32 to vector<8x128xf32>
    %89 = arith.select %87, %80, %88 : vector<8x128xi1>, vector<8x128xf32>
    %cst_53 = arith.constant dense<0xFF800000> : vector<8xf32>
    %90 = vector.multi_reduction <maximumf>, %89, %cst_53 [1] : vector<8x128xf32> to vector<8xf32>
    %91 = vector.shape_cast %90 : vector<8xf32> to vector<8x1xf32>
    %92 = vector.broadcast %91 : vector<8x1xf32> to vector<8x128xf32>
    %93 = arith.cmpf oeq, %89, %92 : vector<8x128xf32>
    %cst_54 = arith.constant 1.280000e+02 : f32
    %94 = vector.broadcast %cst_54 : f32 to vector<8x128xf32>
    %95 = arith.select %93, %85, %94 : vector<8x128xi1>, vector<8x128xf32>
    %cst_55 = arith.constant dense<0x7F800000> : vector<8xf32>
    %96 = vector.multi_reduction <minimumf>, %95, %cst_55 [1] : vector<8x128xf32> to vector<8xf32>
    %97 = vector.shape_cast %96 : vector<8xf32> to vector<8x1xf32>
    %98 = vector.broadcast %97 : vector<8x1xf32> to vector<8x128xf32>
    %99 = arith.cmpf oeq, %85, %98 : vector<8x128xf32>
    %100 = arith.extui %99 : vector<8x128xi1> to vector<8x128xi32>
    %101 = arith.sitofp %100 : vector<8x128xi32> to vector<8x128xf32>
    %102 = arith.index_cast %0 : i32 to index
    %c0_56 = arith.constant 0 : index
    %c0_57 = arith.constant 0 : index
    %103 = vector.load %arg2[%102, %c0_56, %c0_57] : memref<8x1x128xf32, #tpu.memory_space<vmem>>, vector<1x1x128xf32>
    %104 = vector.shape_cast %103 : vector<1x1x128xf32> to vector<1x128xf32>
    %105 = arith.index_cast %0 : i32 to index
    %c0_58 = arith.constant 0 : index
    %c0_59 = arith.constant 0 : index
    %106 = vector.load %arg1[%105, %c0_58, %c0_59] : memref<8x8x128xbf16, #tpu.memory_space<vmem>>, vector<1x8x128xbf16>
    %107 = vector.shape_cast %106 : vector<1x8x128xbf16> to vector<8x128xbf16>
    %108 = arith.extf %107 : vector<8x128xbf16> to vector<8x128xf32>
    %109 = vector.broadcast %104 : vector<1x128xf32> to vector<8x128xf32>
    %110 = arith.mulf %109, %108 : vector<8x128xf32>
    %cst_60 = arith.constant 1.000000e+00 : f32
    %111 = vector.broadcast %cst_60 : f32 to vector<1x128xf32>
    %112 = arith.subf %111, %104 : vector<1x128xf32>
    %113 = vector.broadcast %112 : vector<1x128xf32> to vector<8x128xf32>
    %114 = arith.mulf %113, %101 : vector<8x128xf32>
    %115 = arith.addf %110, %114 : vector<8x128xf32>
    %116 = arith.truncf %115 : vector<8x128xf32> to vector<8x128xbf16>
    %c0_61 = arith.constant 0 : index
    %c0_62 = arith.constant 0 : index
    %117 = vector.load %arg13[%c0_61, %c0_62] : memref<8x128xbf16, #tpu.memory_space<vmem>>, vector<8x128xbf16>
    tpu.vector_store %arg13[%c0_61, %c0_62], %116 {strides = array<i32>} : memref<8x128xbf16, #tpu.memory_space<vmem>>, vector<8x128xbf16>,
    return
  }
  func.func @transform_0(%arg0: i32) -> (i32, i32, i32) {
    %c0_i32 = arith.constant 0 : i32
    %c0_i32_0 = arith.constant 0 : i32
    %c0_i32_1 = arith.constant 0 : i32
    %c0_i32_2 = arith.constant 0 : i32
    return %c0_i32, %c0_i32_0, %c0_i32_1 : i32, i32, i32
  }
  func.func @transform_1(%arg0: i32) -> (i32, i32, i32) {
    %c0_i32 = arith.constant 0 : i32
    %c0_i32_0 = arith.constant 0 : i32
    %c0_i32_1 = arith.constant 0 : i32
    %c0_i32_2 = arith.constant 0 : i32
    return %c0_i32, %c0_i32_0, %c0_i32_1 : i32, i32, i32
  }
  func.func @transform_2(%arg0: i32) -> (i32, i32, i32) {
    %c0_i32 = arith.constant 0 : i32
    %c0_i32_0 = arith.constant 0 : i32
    %c0_i32_1 = arith.constant 0 : i32
    %c0_i32_2 = arith.constant 0 : i32
    return %c0_i32, %c0_i32_0, %c0_i32_1 : i32, i32, i32
  }
  func.func @transform_3(%arg0: i32) -> (i32, i32, i32) {
    %c0_i32 = arith.constant 0 : i32
    %c0_i32_0 = arith.constant 0 : i32
    %c0_i32_1 = arith.constant 0 : i32
    %c0_i32_2 = arith.constant 0 : i32
    return %c0_i32, %c0_i32_0, %c0_i32_1 : i32, i32, i32
  }
  func.func @transform_4(%arg0: i32) -> (i32, i32) {
    %c0_i32 = arith.constant 0 : i32
    %c0_i32_0 = arith.constant 0 : i32
    %c0_i32_1 = arith.constant 0 : i32
    return %c0_i32, %c0_i32_0 : i32, i32
  }
  func.func @transform_5(%arg0: i32) -> (i32, i32, i32) {
    %c0_i32 = arith.constant 0 : i32
    %c0_i32_0 = arith.constant 0 : i32
    %c0_i32_1 = arith.constant 0 : i32
    %c0_i32_2 = arith.constant 0 : i32
    return %c0_i32, %c0_i32_0, %c0_i32_1 : i32, i32, i32
  }
  func.func @transform_6(%arg0: i32) -> (i32, i32, i32) {
    %c0_i32 = arith.constant 0 : i32
    %c0_i32_0 = arith.constant 0 : i32
    %c0_i32_1 = arith.constant 0 : i32
    %c0_i32_2 = arith.constant 0 : i32
    return %c0_i32, %c0_i32_0, %c0_i32_1 : i32, i32, i32
  }
  func.func @transform_7(%arg0: i32) -> (i32, i32) {
    %c0_i32 = arith.constant 0 : i32
    %c0_i32_0 = arith.constant 0 : i32
    %c0_i32_1 = arith.constant 0 : i32
    return %c0_i32, %c0_i32_0 : i32, i32
  }
  func.func @transform_8(%arg0: i32) -> (i32, i32) {
    %c0_i32 = arith.constant 0 : i32
    %c0_i32_0 = arith.constant 0 : i32
    %c0_i32_1 = arith.constant 0 : i32
    return %c0_i32, %c0_i32_0 : i32, i32
  }
  func.func @transform_9(%arg0: i32) -> (i32, i32, i32) {
    %c0_i32 = arith.constant 0 : i32
    %c0_i32_0 = arith.constant 0 : i32
    %c0_i32_1 = arith.constant 0 : i32
    return %arg0, %c0_i32, %c0_i32_0 : i32, i32, i32
  }
}

</mosaic_0001>

<llo_original>
// kernel: seq2seq_forward.2
$region0: #{seq2seq_forward.2}
  #allocation0 [shape = 'u32[]', space=smem, size = 0x4, offset = 0x4, fixed_abs, tag = 'smem constant byte address 0x4 - core index']
  #allocation1 [shape = 'u32[144,128]{1,0:T(1,128)}', space=vmem, size = 0x12000, scoped, tag = 'internal scratch']
  %s0 = inlined_call_operand.vmem [shape: bf16[10,8,128], index: 0, kind: input, shape index: {}]
  %s1 = inlined_call_operand.vmem [shape: bf16[128,32], index: 1, kind: input, shape index: {}]
  %s2 = inlined_call_operand.vmem [shape: bf16[2,64,128], index: 2, kind: input, shape index: {}]
  %s3 = inlined_call_operand.vmem [shape: f32[2,1,128], index: 3, kind: input, shape index: {}]
  %s4 = inlined_call_operand.vmem [shape: f32[2,8,32], index: 4, kind: output, shape index: {0}]
  %s5 = inlined_call_operand.vmem [shape: f32[2,8,32], index: 5, kind: output, shape index: {1}]
  %6 = xla_tuple %s4, %s5
  %s7 = sld [smem:[#allocation0]]
  $region61: #{seq2seq_forward.2} parent=0
    _
  %s9 = ssub.s32 1, %s7
  %s10 = scalar_select 0, %s9, %s7
  loop: start=0, step=1, limit=12
  $region2: #{seq2seq_forward.2} parent=0 // loop_pre_header
    _
  $region3: #{seq2seq_forward.2} parent=0 // loop_header
    %s12 = sphi 0, %s16
    %p13 = scmp.ge.s32.totalorder %s12, 12
    %s22 = sphi 0, %s24
    %s25 = sphi 0, %s22
    %s26 = sphi 0, %s25
    %s42 = sphi 0, %s26
    %s46 = sphi 0, %s46
    %s48 = sphi 0, %s46
    %s49 = sphi 0, %s48
    %s63 = sphi 0, %s49
    %s67 = sphi 0, %s67
    %s69 = sphi 0, %s67
    %s70 = sphi 0, %s69
    %s84 = sphi 0, %s70
    %s88 = sphi 0, %s88
    %s90 = sphi 0, %s88
    %s91 = sphi 0, %s90
    %s105 = sphi 0, %s91
    %s109 = sphi 0, %s109
    %s111 = sphi 0, %s109
    %s112 = sphi 0, %s111
    %s126 = sphi 0, %s112
    %s130 = sphi 0, %s130
    %s132 = sphi 0, %s130
    %s133 = sphi 0, %s132
    %s147 = sphi 0, %s133
  $region4: #{seq2seq_forward.2} parent=0 // loop_header_branch
    %15 = sbr.rel (%p13) target = $region8
  $region5: #{seq2seq_forward.2} parent=0 // loop_body
    %s17 = ssub.s32 %s12, 1
    %s18 = ssub.s32 %s12, 2
    %s19 = sadd.s32 %s12, 1
    %s20 = ssub.s32 %s12, %s19
    %p21 = scmp.eq.s32.totalorder %s20, 0
    %s23 = sadd.s32 %s22, 1
    %s24 = scalar_select %p21, %s22, %s23
    %p27 = pneg %p21
    %p28 = scmp.eq.s32.totalorder %s12, 9
    %p29 = por %p27, %p28
    %p30 = scmp.ne.s32.totalorder %s22, %s25
    %p31 = scmp.eq.s32.totalorder %s12, 0
    %p32 = por %p30, %p31
    %p33 = scmp.ne.s32.totalorder %s22, %s25
    %p34 = scmp.eq.s32.totalorder %s17, 9
    %p35 = por %p33, %p34
    %p36 = scmp.ne.s32.totalorder %s25, %s26
    %p37 = scmp.eq.s32.totalorder %s17, 0
    %p38 = por %p36, %p37
    %p39 = scmp.ne.s32.totalorder %s25, %s26
    %p40 = scmp.eq.s32.totalorder %s18, 9
    %p41 = por %p39, %p40
    %p43 = scmp.ne.s32.totalorder %s26, %s42
    %p44 = scmp.eq.s32.totalorder %s18, 0
    %p45 = por %p43, %p44
    %s47 = sadd.s32 %s46, 1
    %p50 = scmp.eq.s32.totalorder %s12, 9
    %p51 = scmp.ne.s32.totalorder %s46, %s48
    %p52 = scmp.eq.s32.totalorder %s12, 0
    %p53 = por %p51, %p52
    %p54 = scmp.ne.s32.totalorder %s46, %s48
    %p55 = scmp.eq.s32.totalorder %s17, 9
    %p56 = por %p54, %p55
    %p57 = scmp.ne.s32.totalorder %s48, %s49
    %p58 = scmp.eq.s32.totalorder %s17, 0
    %p59 = por %p57, %p58
    %p60 = scmp.ne.s32.totalorder %s48, %s49
    %p61 = scmp.eq.s32.totalorder %s18, 9
    %p62 = por %p60, %p61
    %p64 = scmp.ne.s32.totalorder %s49, %s63
    %p65 = scmp.eq.s32.totalorder %s18, 0
    %p66 = por %p64, %p65
    %s68 = sadd.s32 %s67, 1
    %p71 = scmp.eq.s32.totalorder %s12, 9
    %p72 = scmp.ne.s32.totalorder %s67, %s69
    %p73 = scmp.eq.s32.totalorder %s12, 0
    %p74 = por %p72, %p73
    %p75 = scmp.ne.s32.totalorder %s67, %s69
    %p76 = scmp.eq.s32.totalorder %s17, 9
    %p77 = por %p75, %p76
    %p78 = scmp.ne.s32.totalorder %s69, %s70
    %p79 = scmp.eq.s32.totalorder %s17, 0
    %p80 = por %p78, %p79
    %p81 = scmp.ne.s32.totalorder %s69, %s70
    %p82 = scmp.eq.s32.totalorder %s18, 9
    %p83 = por %p81, %p82
    %p85 = scmp.ne.s32.totalorder %s70, %s84
    %p86 = scmp.eq.s32.totalorder %s18, 0
    %p87 = por %p85, %p86
    %s89 = sadd.s32 %s88, 1
    %p92 = scmp.eq.s32.totalorder %s12, 9
    %p93 = scmp.ne.s32.totalorder %s88, %s90
    %p94 = scmp.eq.s32.totalorder %s12, 0
    %p95 = por %p93, %p94
    %p96 = scmp.ne.s32.totalorder %s88, %s90
    %p97 = scmp.eq.s32.totalorder %s17, 9
    %p98 = por %p96, %p97
    %p99 = scmp.ne.s32.totalorder %s90, %s91
    %p100 = scmp.eq.s32.totalorder %s17, 0
    %p101 = por %p99, %p100
    %p102 = scmp.ne.s32.totalorder %s90, %s91
    %p103 = scmp.eq.s32.totalorder %s18, 9
    %p104 = por %p102, %p103
    %p106 = scmp.ne.s32.totalorder %s91, %s105
    %p107 = scmp.eq.s32.totalorder %s18, 0
    %p108 = por %p106, %p107
    %s110 = sadd.s32 %s109, 1
    %p113 = scmp.eq.s32.totalorder %s12, 9
    %p114 = scmp.ne.s32.totalorder %s109, %s111
    %p115 = scmp.eq.s32.totalorder %s12, 0
    %p116 = por %p114, %p115
    %p117 = scmp.ne.s32.totalorder %s109, %s111
    %p118 = scmp.eq.s32.totalorder %s17, 9
    %p119 = por %p117, %p118
    %p120 = scmp.ne.s32.totalorder %s111, %s112
    %p121 = scmp.eq.s32.totalorder %s17, 0
    %p122 = por %p120, %p121
    %p123 = scmp.ne.s32.totalorder %s111, %s112
    %p124 = scmp.eq.s32.totalorder %s18, 9
    %p125 = por %p123, %p124
    %p127 = scmp.ne.s32.totalorder %s112, %s126
    %p128 = scmp.eq.s32.totalorder %s18, 0
    %p129 = por %p127, %p128
    %s131 = sadd.s32 %s130, 1
    %p134 = scmp.eq.s32.totalorder %s12, 9
    %p135 = scmp.ne.s32.totalorder %s130, %s132
    %p136 = scmp.eq.s32.totalorder %s12, 0
    %p137 = por %p135, %p136
    %p138 = scmp.ne.s32.totalorder %s130, %s132
    %p139 = scmp.eq.s32.totalorder %s17, 9
    %p140 = por %p138, %p139
    %p141 = scmp.ne.s32.totalorder %s132, %s133
    %p142 = scmp.eq.s32.totalorder %s17, 0
    %p143 = por %p141, %p142
    %p144 = scmp.ne.s32.totalorder %s132, %s133
    %p145 = scmp.eq.s32.totalorder %s18, 9
    %p146 = por %p144, %p145
    %p148 = scmp.ne.s32.totalorder %s133, %s147
    %p149 = scmp.eq.s32.totalorder %s18, 0
    %p150 = por %p148, %p149
    %p151 = scmp.le.s32.totalorder 1, %s12
    %p152 = scmp.lt.s32.totalorder %s12, 11
    %p153 = pnand %p151, %p152
    %p154 = pneg %p153
    // Predicated region
    $region9: #{seq2seq_forward.2} parent=5 // pred_check
      _
    $region10: #{seq2seq_forward.2} parent=5 // pred_check_branch
      %156 = sbr.rel (%p153) target = $region12
    $region11: #{seq2seq_forward.2} parent=5 // pred_region
      %s157 = ssub.s32 %s12, 1
      // Predicated region
      $region13: #{seq2seq_forward.2} parent=11 // pred_check
        %p158 = pneg %p59
      $region14: #{seq2seq_forward.2} parent=11 // pred_check_branch
        %160 = sbr.rel (%p158) target = $region16
      $region15: #{seq2seq_forward.2} parent=11 // pred_region
        _
      $region16: #{seq2seq_forward.2} parent=11 // pred_fallthru
        _
      // Predicated region
      $region17: #{seq2seq_forward.2} parent=11 // pred_check
        %p161 = pneg %p80
      $region18: #{seq2seq_forward.2} parent=11 // pred_check_branch
        %163 = sbr.rel (%p161) target = $region20
      $region19: #{seq2seq_forward.2} parent=11 // pred_region
        _
      $region20: #{seq2seq_forward.2} parent=11 // pred_fallthru
        _
      // Predicated region
      $region21: #{seq2seq_forward.2} parent=11 // pred_check
        %p164 = pneg %p101
      $region22: #{seq2seq_forward.2} parent=11 // pred_check_branch
        %166 = sbr.rel (%p164) target = $region24
      $region23: #{seq2seq_forward.2} parent=11 // pred_region
        _
      $region24: #{seq2seq_forward.2} parent=11 // pred_fallthru
        _
    $region12: #{seq2seq_forward.2} parent=5 // pred_fallthru
      _
    %p167 = scmp.lt.s32.totalorder %s12, 10
    // Predicated region
    $region25: #{seq2seq_forward.2} parent=5 // pred_check
      %p168 = pneg %p167
    $region26: #{seq2seq_forward.2} parent=5 // pred_check_branch
      %170 = sbr.rel (%p168) target = $region28
    $region27: #{seq2seq_forward.2} parent=5 // pred_region
      // Predicated region
      $region29: #{seq2seq_forward.2} parent=27 // pred_check
        %p171 = pneg %p32
      $region30: #{seq2seq_forward.2} parent=27 // pred_check_branch
        %173 = sbr.rel (%p171) target = $region32
      $region31: #{seq2seq_forward.2} parent=27 // pred_region
        %p174 = scmp.lt.s32.totalorder %s12, 9
        %s175 = scalar_select %p174, %s12, 9
        %s176 = smul.addr %s175, 4
        %s177 = scalar_lea.vmem %s0, %s176
      $region32: #{seq2seq_forward.2} parent=27 // pred_fallthru
        _
    $region28: #{seq2seq_forward.2} parent=5 // pred_fallthru
      _
    %p178 = scmp.le.s32.totalorder 1, %s12
    %p179 = scmp.lt.s32.totalorder %s12, 11
    %p180 = pnand %p178, %p179
    %p181 = pneg %p180
    // Predicated region
    $region33: #{seq2seq_forward.2} parent=5 // pred_check
      _
    $region34: #{seq2seq_forward.2} parent=5 // pred_check_branch
      %183 = sbr.rel (%p180) target = $region36
    $region35: #{seq2seq_forward.2} parent=5 // pred_region
      %s184 = ssub.s32 %s12, 1
      %p185 = scmp.lt.s32.totalorder %s17, 9
      %s186 = scalar_select %p185, %s17, 9
      %s187 = smul.addr %s186, 4
      %s188 = scalar_lea.vmem %s0, %s187
      %p189 = pneg %p38
      %p190 = pneg %p35
      %p191 = pneg %p59
      %p192 = pneg %p56
      %p193 = pneg %p80
      %p194 = pneg %p77
      %p195 = pneg %p101
      %p196 = pneg %p98
      %p197 = pneg %p122
      %p198 = pneg %p119
      %p199 = pneg %p143
      %p200 = pneg %p140
      %p201 = scmp.lt.s32.totalorder %s17, 9
      %s202 = scalar_select %p201, %s17, 9
      %s203 = smul.addr %s202, 4
      %s204 = scalar_lea.vmem %s0, %s203
      %p206 = scmp.eq.s32.totalorder %s17, 0
      // Predicated region
      $region37: #{seq2seq_forward.2} parent=35 // pred_check
        %p207 = pneg %p206
      $region38: #{seq2seq_forward.2} parent=35 // pred_check_branch
        %209 = sbr.rel (%p207) target = $region40
      $region39: #{seq2seq_forward.2} parent=35 // pred_region
        %vm210 = vcmask 261120
        %211 = vst.msk [vmem:[%s4] sm:$0xff] %vm210, 0.0
        %212 = vst.msk [vmem:[%s4 + $0x8] sm:$0xff] %vm210, 0.0
        %213 = vst.msk [vmem:[%s5] sm:$0xff] %vm210, 0.0
        %214 = vst.msk [vmem:[%s5 + $0x8] sm:$0xff] %vm210, 0.0
      $region40: #{seq2seq_forward.2} parent=35 // pred_fallthru
        _
      %v215 = vld [vmem:[%s204] sm:$0xf]
      %v216 = vld [vmem:[%s1] sm:$0xf]
      %v217 = vld [vmem:[%s1 + $0x4] sm:$0xf]
      %v218 = vld [vmem:[%s1 + $0x8] sm:$0xf]
      %v219 = vld [vmem:[%s1 + $0xc] sm:$0xf]
      %v220 = vld [vmem:[%s1 + $0x10] sm:$0xf]
      %v221 = vld [vmem:[%s1 + $0x14] sm:$0xf]
      %v222 = vld [vmem:[%s1 + $0x18] sm:$0xf]
      %v223 = vld [vmem:[%s1 + $0x1c] sm:$0xf]
      %v224 = vld [vmem:[%s1 + $0x20] sm:$0xf]
      %v225 = vld [vmem:[%s1 + $0x24] sm:$0xf]
      %v226 = vld [vmem:[%s1 + $0x28] sm:$0xf]
      %v227 = vld [vmem:[%s1 + $0x2c] sm:$0xf]
      %v228 = vld [vmem:[%s1 + $0x30] sm:$0xf]
      %v229 = vld [vmem:[%s1 + $0x34] sm:$0xf]
      %v230 = vld [vmem:[%s1 + $0x38] sm:$0xf]
      %v231 = vld [vmem:[%s1 + $0x3c] sm:$0xf]
      %v248 = vunpack.c.l.b16 %v216
      %v249 = vunpack.c.l.b16 %v217
      %v250 = vunpack.c.l.b16 %v218
      %v251 = vunpack.c.l.b16 %v219
      %v252 = vunpack.c.l.b16 %v220
      %v253 = vunpack.c.l.b16 %v221
      %v254 = vunpack.c.l.b16 %v222
      %v255 = vunpack.c.l.b16 %v223
      %v256 = vunpack.c.l.b16 %v224
      %v257 = vunpack.c.l.b16 %v225
      %v258 = vunpack.c.l.b16 %v226
      %v259 = vunpack.c.l.b16 %v227
      %v260 = vunpack.c.l.b16 %v228
      %v261 = vunpack.c.l.b16 %v229
      %v262 = vunpack.c.l.b16 %v230
      %v263 = vunpack.c.l.b16 %v231
      %v264 = vpack.c.b16 %v249, %v248
      %v265 = vpack.c.b16 %v251, %v250
      %v266 = vpack.c.b16 %v253, %v252
      %v267 = vpack.c.b16 %v255, %v254
      %v268 = vpack.c.b16 %v257, %v256
      %v269 = vpack.c.b16 %v259, %v258
      %v270 = vpack.c.b16 %v261, %v260
      %v271 = vpack.c.b16 %v263, %v262
      %280 = vmatprep.subr.bf16.mxu0 0
      %281 = vmatpush1.bf16.msra.mxu0 %v264
      %282 = vmatprep.subr.bf16.mxu0 0
      %283 = vmatpush1.bf16.msra.mxu0 %v265
      %284 = vmatprep.subr.bf16.mxu0 0
      %285 = vmatpush1.bf16.msra.mxu0 %v266
      %286 = vmatprep.subr.bf16.mxu0 0
      %287 = vmatpush1.bf16.msra.mxu0 %v267
      %288 = vmatprep.subr.bf16.mxu0 0
      %289 = vmatpush1.bf16.msra.mxu0 %v268
      %290 = vmatprep.subr.bf16.mxu0 0
      %291 = vmatpush1.bf16.msra.mxu0 %v269
      %292 = vmatprep.subr.bf16.mxu0 0
      %293 = vmatpush1.bf16.msra.mxu0 %v270
      %294 = vmatprep.subr.bf16.mxu0 0
      %295 = vmatpush1.bf16.msra.mxu0 %v271
      %296 = vmatprep.subr.bf16.mxu0 0
      %297 = vmatpush1.bf16.msra.mxu0 0
      %298 = vmatprep.subr.bf16.mxu0 0
      %299 = vmatpush1.bf16.msra.mxu0 0
      %300 = vmatprep.subr.bf16.mxu0 0
      %301 = vmatpush1.bf16.msra.mxu0 0
      %302 = vmatprep.subr.bf16.mxu0 0
      %303 = vmatpush1.bf16.msra.mxu0 0
      %304 = vmatprep.subr.bf16.mxu0 0
      %305 = vmatpush1.bf16.msra.mxu0 0
      %306 = vmatprep.subr.bf16.mxu0 0
      %307 = vmatpush1.bf16.msra.mxu0 0
      %308 = vmatprep.subr.bf16.mxu0 0
      %309 = vmatpush1.bf16.msra.mxu0 0
      %310 = vmatprep.subr.bf16.mxu0 0
      %311 = vmatpush1.bf16.msra.mxu0 0
      %312 = vmatprep.mubr.bf16.mxu0 0
      %313 = vmatmul.mubr.bf16.gmra.mrb[0].mxu0 %v215
      %v314 = vpop.f32.mrb[0].mxu0
      %v315 = vadd.f32 0.0, %v314
      %v316 = vpop.f32.mrb[0].mxu0
      %v317 = vpop.f32.mrb[0].mxu0
      %v318 = vpop.f32.mrb[0].mxu0
      %319 = vdwg.mxu0
      %v320 = vld [vmem:[%s4] sm:$0xff]
      %v321 = vld [vmem:[%s5] sm:$0xff]
      %323 = vrot.lane.b32.xlu0 %v320, 32
      %v324 = vpop.permute.xlu0 %323
      %vm326 = vcmask 261120
      %v327 = vsel %vm326, %v315, %v324
      %v328 = vpack.c.bf16 %v327, %v327
      %v329 = vld [vmem:[%s2] sm:$0xf]
      %v330 = vld [vmem:[%s2 + $0x4] sm:$0xf]
      %v331 = vld [vmem:[%s2 + $0x8] sm:$0xf]
      %v332 = vld [vmem:[%s2 + $0xc] sm:$0xf]
      %v333 = vld [vmem:[%s2 + $0x10] sm:$0xf]
      %v334 = vld [vmem:[%s2 + $0x14] sm:$0xf]
      %v335 = vld [vmem:[%s2 + $0x18] sm:$0xf]
      %v336 = vld [vmem:[%s2 + $0x1c] sm:$0xf]
      %v337 = vld [vmem:[%s3] sm:$0x1]
      %v339 = vlaneseq
      %v340 = vshrl.u32 %v339, 7
      %v341 = vsub.s32 0, %v340
      %v342 = vrot.slane %v337, %v341
      %v352 = vunpack.c.l.b16 %v329
      %v353 = vunpack.c.l.b16 %v330
      %v354 = vunpack.c.l.b16 %v331
      %v355 = vunpack.c.l.b16 %v332
      %v356 = vunpack.c.l.b16 %v333
      %v357 = vunpack.c.l.b16 %v334
      %v358 = vunpack.c.l.b16 %v335
      %v359 = vunpack.c.l.b16 %v336
      %v360 = vpack.c.b16 %v353, %v352
      %v361 = vpack.c.b16 %v355, %v354
      %v362 = vpack.c.b16 %v357, %v356
      %v363 = vpack.c.b16 %v359, %v358
      %vm368 = vcmask 523264
      %v370 = vsel %vm368, %v328, 0
      %372 = vmatprep.subr.bf16.mxu0 0
      %373 = vmatpush1.bf16.msra.mxu0 %v360
      %374 = vmatprep.subr.bf16.mxu0 0
      %375 = vmatpush1.bf16.msra.mxu0 %v361
      %376 = vmatprep.subr.bf16.mxu0 0
      %377 = vmatpush1.bf16.msra.mxu0 %v362
      %378 = vmatprep.subr.bf16.mxu0 0
      %379 = vmatpush1.bf16.msra.mxu0 %v363
      %380 = vmatprep.subr.bf16.mxu0 0
      %381 = vmatpush1.bf16.msra.mxu0 0
      %382 = vmatprep.subr.bf16.mxu0 0
      %383 = vmatpush1.bf16.msra.mxu0 0
      %384 = vmatprep.subr.bf16.mxu0 0
      %385 = vmatpush1.bf16.msra.mxu0 0
      %386 = vmatprep.subr.bf16.mxu0 0
      %387 = vmatpush1.bf16.msra.mxu0 0
      %388 = vmatprep.subr.bf16.mxu0 0
      %389 = vmatpush1.bf16.msra.mxu0 0
      %390 = vmatprep.subr.bf16.mxu0 0
      %391 = vmatpush1.bf16.msra.mxu0 0
      %392 = vmatprep.subr.bf16.mxu0 0
      %393 = vmatpush1.bf16.msra.mxu0 0
      %394 = vmatprep.subr.bf16.mxu0 0
      %395 = vmatpush1.bf16.msra.mxu0 0
      %396 = vmatprep.subr.bf16.mxu0 0
      %397 = vmatpush1.bf16.msra.mxu0 0
      %398 = vmatprep.subr.bf16.mxu0 0
      %399 = vmatpush1.bf16.msra.mxu0 0
      %400 = vmatprep.subr.bf16.mxu0 0
      %401 = vmatpush1.bf16.msra.mxu0 0
      %402 = vmatprep.subr.bf16.mxu0 0
      %403 = vmatpush1.bf16.msra.mxu0 0
      %404 = vmatprep.mubr.bf16.mxu0 0
      %405 = vmatmul.mubr.bf16.gmra.mrb[0].mxu0 %v370
      %v406 = vpop.f32.mrb[0].mxu0
      %v407 = vadd.f32 %v342, %v406
      %v408 = vpop.f32.mrb[0].mxu0
      %v409 = vpop.f32.mrb[0].mxu0
      %v410 = vpop.f32.mrb[0].mxu0
      %411 = vdwg.mxu0
      %v412 = vxor.u32 %v407, 2147483648
      %v413 = vmul.f32 %v412, 1.442695
      %v414 = vpow.pop %v413
      %v415 = vadd.f32 %v414, 1.0
      %v416 = vrcp.pop %v415
      %v417 = vmul.f32 1.0, %v416
      %v418 = vtanh.pop %v407
      %420 = vrot.lane.b32.xlu0 %v321, 32
      %v421 = vpop.permute.xlu0 %420
      %v423 = vmul.f32 %v417, %v421
      %425 = vrot.lane.b32.xlu0 %v418, 64
      %v426 = vpop.permute.xlu0 %425
      %v428 = vmul.f32 %v417, %v426
      %430 = vrot.lane.b32.xlu0 %v428, 32
      %v431 = vpop.permute.xlu0 %430
      %v433 = vadd.f32 %v423, %v431
      %v434 = vtanh.pop %v433
      %436 = vrot.lane.b32.xlu0 %v434, 64
      %v437 = vpop.permute.xlu0 %436
      %v439 = vmul.f32 %v417, %v437
      %441 = vrot.lane.b32.xlu0 %v439, 32
      %v442 = vpop.permute.xlu0 %441
      %444 = vst.msk [vmem:[%s4] sm:$0xff] %vm326, %v442
      %446 = vrot.lane.b32.xlu0 %v433, 96
      %v447 = vpop.permute.xlu0 %446
      %449 = vst.msk [vmem:[%s5] sm:$0xff] %vm326, %v447
      %s450 = scalar_lea.vmem %s4, 8
      %v451 = vld [vmem:[%s450] sm:$0xff]
      %s452 = scalar_lea.vmem %s5, 8
      %v453 = vld [vmem:[%s452] sm:$0xff]
      %455 = vrot.lane.b32.xlu0 %v451, 32
      %v456 = vpop.permute.xlu0 %455
      %v458 = vsel %vm326, %v442, %v456
      %v459 = vpack.c.bf16 %v458, %v458
      %s460 = scalar_lea.vmem %s2, 32
      %v461 = vld [vmem:[%s460] sm:$0xf]
      %v462 = vld [vmem:[%s460 + $0x4] sm:$0xf]
      %v463 = vld [vmem:[%s460 + $0x8] sm:$0xf]
      %v464 = vld [vmem:[%s460 + $0xc] sm:$0xf]
      %v465 = vld [vmem:[%s460 + $0x10] sm:$0xf]
      %v466 = vld [vmem:[%s460 + $0x14] sm:$0xf]
      %v467 = vld [vmem:[%s460 + $0x18] sm:$0xf]
      %v468 = vld [vmem:[%s460 + $0x1c] sm:$0xf]
      %s469 = scalar_lea.vmem %s3, 1
      %v470 = vld [vmem:[%s469] sm:$0x1]
      %v472 = vlaneseq
      %v473 = vshrl.u32 %v472, 7
      %v474 = vsub.s32 0, %v473
      %v475 = vrot.slane %v470, %v474
      %v485 = vunpack.c.l.b16 %v461
      %v486 = vunpack.c.l.b16 %v462
      %v487 = vunpack.c.l.b16 %v463
      %v488 = vunpack.c.l.b16 %v464
      %v489 = vunpack.c.l.b16 %v465
      %v490 = vunpack.c.l.b16 %v466
      %v491 = vunpack.c.l.b16 %v467
      %v492 = vunpack.c.l.b16 %v468
      %v493 = vpack.c.b16 %v486, %v485
      %v494 = vpack.c.b16 %v488, %v487
      %v495 = vpack.c.b16 %v490, %v489
      %v496 = vpack.c.b16 %v492, %v491
      %v502 = vsel %vm368, %v459, 0
      %504 = vmatprep.subr.bf16.mxu0 0
      %505 = vmatpush1.bf16.msra.mxu0 %v493
      %506 = vmatprep.subr.bf16.mxu0 0
      %507 = vmatpush1.bf16.msra.mxu0 %v494
      %508 = vmatprep.subr.bf16.mxu0 0
      %509 = vmatpush1.bf16.msra.mxu0 %v495
      %510 = vmatprep.subr.bf16.mxu0 0
      %511 = vmatpush1.bf16.msra.mxu0 %v496
      %512 = vmatprep.subr.bf16.mxu0 0
      %513 = vmatpush1.bf16.msra.mxu0 0
      %514 = vmatprep.subr.bf16.mxu0 0
      %515 = vmatpush1.bf16.msra.mxu0 0
      %516 = vmatprep.subr.bf16.mxu0 0
      %517 = vmatpush1.bf16.msra.mxu0 0
      %518 = vmatprep.subr.bf16.mxu0 0
      %519 = vmatpush1.bf16.msra.mxu0 0
      %520 = vmatprep.subr.bf16.mxu0 0
      %521 = vmatpush1.bf16.msra.mxu0 0
      %522 = vmatprep.subr.bf16.mxu0 0
      %523 = vmatpush1.bf16.msra.mxu0 0
      %524 = vmatprep.subr.bf16.mxu0 0
      %525 = vmatpush1.bf16.msra.mxu0 0
      %526 = vmatprep.subr.bf16.mxu0 0
      %527 = vmatpush1.bf16.msra.mxu0 0
      %528 = vmatprep.subr.bf16.mxu0 0
      %529 = vmatpush1.bf16.msra.mxu0 0
      %530 = vmatprep.subr.bf16.mxu0 0
      %531 = vmatpush1.bf16.msra.mxu0 0
      %532 = vmatprep.subr.bf16.mxu0 0
      %533 = vmatpush1.bf16.msra.mxu0 0
      %534 = vmatprep.subr.bf16.mxu0 0
      %535 = vmatpush1.bf16.msra.mxu0 0
      %536 = vmatprep.mubr.bf16.mxu0 0
      %537 = vmatmul.mubr.bf16.gmra.mrb[0].mxu0 %v502
      %v538 = vpop.f32.mrb[0].mxu0
      %v539 = vadd.f32 %v475, %v538
      %v540 = vpop.f32.mrb[0].mxu0
      %v541 = vpop.f32.mrb[0].mxu0
      %v542 = vpop.f32.mrb[0].mxu0
      %543 = vdwg.mxu0
      %v544 = vxor.u32 %v539, 2147483648
      %v545 = vmul.f32 %v544, 1.442695
      %v546 = vpow.pop %v545
      %v547 = vadd.f32 %v546, 1.0
      %v548 = vrcp.pop %v547
      %v549 = vmul.f32 1.0, %v548
      %v550 = vtanh.pop %v539
      %552 = vrot.lane.b32.xlu0 %v453, 32
      %v553 = vpop.permute.xlu0 %552
      %v555 = vmul.f32 %v549, %v553
      %557 = vrot.lane.b32.xlu0 %v550, 64
      %v558 = vpop.permute.xlu0 %557
      %v560 = vmul.f32 %v549, %v558
      %562 = vrot.lane.b32.xlu0 %v560, 32
      %v563 = vpop.permute.xlu0 %562
      %v565 = vadd.f32 %v555, %v563
      %v566 = vtanh.pop %v565
      %568 = vrot.lane.b32.xlu0 %v566, 64
      %v569 = vpop.permute.xlu0 %568
      %v571 = vmul.f32 %v549, %v569
      %573 = vrot.lane.b32.xlu0 %v571, 32
      %v574 = vpop.permute.xlu0 %573
      %576 = vst.msk [vmem:[%s450] sm:$0xff] %vm326, %v574
      %578 = vrot.lane.b32.xlu0 %v565, 96
      %v579 = vpop.permute.xlu0 %578
      %581 = vst.msk [vmem:[%s452] sm:$0xff] %vm326, %v579
      // Predicated region
      $region41: #{seq2seq_forward.2} parent=35 // pred_check
        %p582 = pneg %p119
      $region42: #{seq2seq_forward.2} parent=35 // pred_check_branch
        %584 = sbr.rel (%p582) target = $region44
      $region43: #{seq2seq_forward.2} parent=35 // pred_region
        _
      $region44: #{seq2seq_forward.2} parent=35 // pred_fallthru
        _
      // Predicated region
      $region45: #{seq2seq_forward.2} parent=35 // pred_check
        %p585 = pneg %p140
      $region46: #{seq2seq_forward.2} parent=35 // pred_check_branch
        %587 = sbr.rel (%p585) target = $region48
      $region47: #{seq2seq_forward.2} parent=35 // pred_region
        _
      $region48: #{seq2seq_forward.2} parent=35 // pred_fallthru
        _
      // Predicated region
      $region49: #{seq2seq_forward.2} parent=35 // pred_check
        %p588 = pneg %p119
      $region50: #{seq2seq_forward.2} parent=35 // pred_check_branch
        %590 = sbr.rel (%p588) target = $region52
      $region51: #{seq2seq_forward.2} parent=35 // pred_region
        _
      $region52: #{seq2seq_forward.2} parent=35 // pred_fallthru
        _
      // Predicated region
      $region53: #{seq2seq_forward.2} parent=35 // pred_check
        %p591 = pneg %p140
      $region54: #{seq2seq_forward.2} parent=35 // pred_check_branch
        %593 = sbr.rel (%p591) target = $region56
      $region55: #{seq2seq_forward.2} parent=35 // pred_region
        _
      $region56: #{seq2seq_forward.2} parent=35 // pred_fallthru
        _
    $region36: #{seq2seq_forward.2} parent=5 // pred_fallthru
      _
    %p594 = scmp.le.s32.totalorder 2, %s12
    // Predicated region
    $region57: #{seq2seq_forward.2} parent=5 // pred_check
      %p595 = pneg %p594
    $region58: #{seq2seq_forward.2} parent=5 // pred_check_branch
      %597 = sbr.rel (%p595) target = $region60
    $region59: #{seq2seq_forward.2} parent=5 // pred_region
      %s598 = ssub.s32 %s12, 2
    $region60: #{seq2seq_forward.2} parent=5 // pred_fallthru
      _
  $region6: #{seq2seq_forward.2} parent=0 // loop_footer
    %s16 = sadd.s32 1, %s12
  $region7: #{seq2seq_forward.2} parent=0 // loop_footer_branch
    %11 = sbr.rel target = $region3
  $region8: #{seq2seq_forward.2} parent=0 // loop_exit
    _

// kernel: seq2seq_forward.3
$region0: #{seq2seq_forward.3}
  #allocation0 [shape = 'u32[]', space=smem, size = 0x4, offset = 0x4, fixed_abs, tag = 'smem constant byte address 0x4 - core index']
  #allocation1 [shape = 'u32[144,128]{1,0:T(1,128)}', space=vmem, size = 0x12000, scoped, tag = 'internal scratch']
  #allocation2 [shape = 'f32[2,8,32]{2,1,0:T(8,128)}', space=vmem, size = 0x2000, scoped, tag = 'scratch operand']
  #allocation3 [shape = 'f32[2,8,32]{2,1,0:T(8,128)}', space=vmem, size = 0x2000, scoped, tag = 'scratch operand']
  #allocation4 [shape = 'bf16[8,128]{1,0:T(8,128)(2,1)}', space=vmem, size = 0x800, scoped, tag = 'scratch operand']
  %s0 = inlined_call_operand.vmem [shape: bf16[8,8,128], index: 0, kind: input, shape index: {}]
  %s1 = inlined_call_operand.vmem [shape: f32[8,1,128], index: 1, kind: input, shape index: {}]
  %s2 = inlined_call_operand.vmem [shape: f32[2,8,32], index: 2, kind: input, shape index: {}]
  %s3 = inlined_call_operand.vmem [shape: f32[2,8,32], index: 3, kind: input, shape index: {}]
  %s4 = inlined_call_operand.vmem [shape: bf16[128,32], index: 4, kind: input, shape index: {}]
  %s5 = inlined_call_operand.vmem [shape: bf16[2,64,128], index: 5, kind: input, shape index: {}]
  %s6 = inlined_call_operand.vmem [shape: f32[2,1,128], index: 6, kind: input, shape index: {}]
  %s7 = inlined_call_operand.vmem [shape: bf16[32,128], index: 7, kind: input, shape index: {}]
  %s8 = inlined_call_operand.vmem [shape: f32[1,128], index: 8, kind: input, shape index: {}]
  %s9 = inlined_call_operand.vmem [shape: f32[7,8,128], index: 9, kind: output, shape index: {}]
  %s10 = sld [smem:[#allocation0]]
  $region73: #{seq2seq_forward.3} parent=0
    _
  %s12 = ssub.s32 1, %s10
  %s13 = scalar_select 0, %s12, %s10
  loop: start=0, step=1, limit=9
  $region2: #{seq2seq_forward.3} parent=0 // loop_pre_header
    _
  $region3: #{seq2seq_forward.3} parent=0 // loop_header
    %s15 = sphi 0, %s19
    %p16 = scmp.ge.s32.totalorder %s15, 9
    %s23 = sphi 0, %s23
    %s25 = sphi 0, %s23
    %s26 = sphi 0, %s25
    %s40 = sphi 0, %s26
    %s44 = sphi 0, %s44
    %s46 = sphi 0, %s44
    %s47 = sphi 0, %s46
    %s61 = sphi 0, %s47
    %s65 = sphi 0, %s65
    %s67 = sphi 0, %s65
    %s68 = sphi 0, %s67
    %s82 = sphi 0, %s68
    %s86 = sphi 0, %s86
    %s88 = sphi 0, %s86
    %s89 = sphi 0, %s88
    %s103 = sphi 0, %s89
    %s107 = sphi 0, %s107
    %s109 = sphi 0, %s107
    %s110 = sphi 0, %s109
    %s124 = sphi 0, %s110
    %s128 = sphi 0, %s128
    %s130 = sphi 0, %s128
    %s131 = sphi 0, %s130
    %s145 = sphi 0, %s131
    %s149 = sphi 0, %s149
    %s151 = sphi 0, %s149
    %s152 = sphi 0, %s151
    %s166 = sphi 0, %s152
    %s170 = sphi 0, %s170
    %s172 = sphi 0, %s170
    %s173 = sphi 0, %s172
    %s187 = sphi 0, %s173
    %s191 = sphi 0, %s191
    %s193 = sphi 0, %s191
    %s194 = sphi 0, %s193
    %s208 = sphi 0, %s194
    %s214 = sphi 0, %s216
    %s217 = sphi 0, %s214
    %s218 = sphi 0, %s217
    %s234 = sphi 0, %s218
  $region4: #{seq2seq_forward.3} parent=0 // loop_header_branch
    %18 = sbr.rel (%p16) target = $region8
  $region5: #{seq2seq_forward.3} parent=0 // loop_body
    %s20 = ssub.s32 %s15, 1
    %s21 = ssub.s32 %s15, 2
    %s22 = sadd.s32 %s15, 1
    %s24 = sadd.s32 %s23, 1
    %p27 = scmp.eq.s32.totalorder %s15, 6
    %p28 = scmp.ne.s32.totalorder %s23, %s25
    %p29 = scmp.eq.s32.totalorder %s15, 0
    %p30 = por %p28, %p29
    %p31 = scmp.ne.s32.totalorder %s23, %s25
    %p32 = scmp.eq.s32.totalorder %s20, 6
    %p33 = por %p31, %p32
    %p34 = scmp.ne.s32.totalorder %s25, %s26
    %p35 = scmp.eq.s32.totalorder %s20, 0
    %p36 = por %p34, %p35
    %p37 = scmp.ne.s32.totalorder %s25, %s26
    %p38 = scmp.eq.s32.totalorder %s21, 6
    %p39 = por %p37, %p38
    %p41 = scmp.ne.s32.totalorder %s26, %s40
    %p42 = scmp.eq.s32.totalorder %s21, 0
    %p43 = por %p41, %p42
    %s45 = sadd.s32 %s44, 1
    %p48 = scmp.eq.s32.totalorder %s15, 6
    %p49 = scmp.ne.s32.totalorder %s44, %s46
    %p50 = scmp.eq.s32.totalorder %s15, 0
    %p51 = por %p49, %p50
    %p52 = scmp.ne.s32.totalorder %s44, %s46
    %p53 = scmp.eq.s32.totalorder %s20, 6
    %p54 = por %p52, %p53
    %p55 = scmp.ne.s32.totalorder %s46, %s47
    %p56 = scmp.eq.s32.totalorder %s20, 0
    %p57 = por %p55, %p56
    %p58 = scmp.ne.s32.totalorder %s46, %s47
    %p59 = scmp.eq.s32.totalorder %s21, 6
    %p60 = por %p58, %p59
    %p62 = scmp.ne.s32.totalorder %s47, %s61
    %p63 = scmp.eq.s32.totalorder %s21, 0
    %p64 = por %p62, %p63
    %s66 = sadd.s32 %s65, 1
    %p69 = scmp.eq.s32.totalorder %s15, 6
    %p70 = scmp.ne.s32.totalorder %s65, %s67
    %p71 = scmp.eq.s32.totalorder %s15, 0
    %p72 = por %p70, %p71
    %p73 = scmp.ne.s32.totalorder %s65, %s67
    %p74 = scmp.eq.s32.totalorder %s20, 6
    %p75 = por %p73, %p74
    %p76 = scmp.ne.s32.totalorder %s67, %s68
    %p77 = scmp.eq.s32.totalorder %s20, 0
    %p78 = por %p76, %p77
    %p79 = scmp.ne.s32.totalorder %s67, %s68
    %p80 = scmp.eq.s32.totalorder %s21, 6
    %p81 = por %p79, %p80
    %p83 = scmp.ne.s32.totalorder %s68, %s82
    %p84 = scmp.eq.s32.totalorder %s21, 0
    %p85 = por %p83, %p84
    %s87 = sadd.s32 %s86, 1
    %p90 = scmp.eq.s32.totalorder %s15, 6
    %p91 = scmp.ne.s32.totalorder %s86, %s88
    %p92 = scmp.eq.s32.totalorder %s15, 0
    %p93 = por %p91, %p92
    %p94 = scmp.ne.s32.totalorder %s86, %s88
    %p95 = scmp.eq.s32.totalorder %s20, 6
    %p96 = por %p94, %p95
    %p97 = scmp.ne.s32.totalorder %s88, %s89
    %p98 = scmp.eq.s32.totalorder %s20, 0
    %p99 = por %p97, %p98
    %p100 = scmp.ne.s32.totalorder %s88, %s89
    %p101 = scmp.eq.s32.totalorder %s21, 6
    %p102 = por %p100, %p101
    %p104 = scmp.ne.s32.totalorder %s89, %s103
    %p105 = scmp.eq.s32.totalorder %s21, 0
    %p106 = por %p104, %p105
    %s108 = sadd.s32 %s107, 1
    %p111 = scmp.eq.s32.totalorder %s15, 6
    %p112 = scmp.ne.s32.totalorder %s107, %s109
    %p113 = scmp.eq.s32.totalorder %s15, 0
    %p114 = por %p112, %p113
    %p115 = scmp.ne.s32.totalorder %s107, %s109
    %p116 = scmp.eq.s32.totalorder %s20, 6
    %p117 = por %p115, %p116
    %p118 = scmp.ne.s32.totalorder %s109, %s110
    %p119 = scmp.eq.s32.totalorder %s20, 0
    %p120 = por %p118, %p119
    %p121 = scmp.ne.s32.totalorder %s109, %s110
    %p122 = scmp.eq.s32.totalorder %s21, 6
    %p123 = por %p121, %p122
    %p125 = scmp.ne.s32.totalorder %s110, %s124
    %p126 = scmp.eq.s32.totalorder %s21, 0
    %p127 = por %p125, %p126
    %s129 = sadd.s32 %s128, 1
    %p132 = scmp.eq.s32.totalorder %s15, 6
    %p133 = scmp.ne.s32.totalorder %s128, %s130
    %p134 = scmp.eq.s32.totalorder %s15, 0
    %p135 = por %p133, %p134
    %p136 = scmp.ne.s32.totalorder %s128, %s130
    %p137 = scmp.eq.s32.totalorder %s20, 6
    %p138 = por %p136, %p137
    %p139 = scmp.ne.s32.totalorder %s130, %s131
    %p140 = scmp.eq.s32.totalorder %s20, 0
    %p141 = por %p139, %p140
    %p142 = scmp.ne.s32.totalorder %s130, %s131
    %p143 = scmp.eq.s32.totalorder %s21, 6
    %p144 = por %p142, %p143
    %p146 = scmp.ne.s32.totalorder %s131, %s145
    %p147 = scmp.eq.s32.totalorder %s21, 0
    %p148 = por %p146, %p147
    %s150 = sadd.s32 %s149, 1
    %p153 = scmp.eq.s32.totalorder %s15, 6
    %p154 = scmp.ne.s32.totalorder %s149, %s151
    %p155 = scmp.eq.s32.totalorder %s15, 0
    %p156 = por %p154, %p155
    %p157 = scmp.ne.s32.totalorder %s149, %s151
    %p158 = scmp.eq.s32.totalorder %s20, 6
    %p159 = por %p157, %p158
    %p160 = scmp.ne.s32.totalorder %s151, %s152
    %p161 = scmp.eq.s32.totalorder %s20, 0
    %p162 = por %p160, %p161
    %p163 = scmp.ne.s32.totalorder %s151, %s152
    %p164 = scmp.eq.s32.totalorder %s21, 6
    %p165 = por %p163, %p164
    %p167 = scmp.ne.s32.totalorder %s152, %s166
    %p168 = scmp.eq.s32.totalorder %s21, 0
    %p169 = por %p167, %p168
    %s171 = sadd.s32 %s170, 1
    %p174 = scmp.eq.s32.totalorder %s15, 6
    %p175 = scmp.ne.s32.totalorder %s170, %s172
    %p176 = scmp.eq.s32.totalorder %s15, 0
    %p177 = por %p175, %p176
    %p178 = scmp.ne.s32.totalorder %s170, %s172
    %p179 = scmp.eq.s32.totalorder %s20, 6
    %p180 = por %p178, %p179
    %p181 = scmp.ne.s32.totalorder %s172, %s173
    %p182 = scmp.eq.s32.totalorder %s20, 0
    %p183 = por %p181, %p182
    %p184 = scmp.ne.s32.totalorder %s172, %s173
    %p185 = scmp.eq.s32.totalorder %s21, 6
    %p186 = por %p184, %p185
    %p188 = scmp.ne.s32.totalorder %s173, %s187
    %p189 = scmp.eq.s32.totalorder %s21, 0
    %p190 = por %p188, %p189
    %s192 = sadd.s32 %s191, 1
    %p195 = scmp.eq.s32.totalorder %s15, 6
    %p196 = scmp.ne.s32.totalorder %s191, %s193
    %p197 = scmp.eq.s32.totalorder %s15, 0
    %p198 = por %p196, %p197
    %p199 = scmp.ne.s32.totalorder %s191, %s193
    %p200 = scmp.eq.s32.totalorder %s20, 6
    %p201 = por %p199, %p200
    %p202 = scmp.ne.s32.totalorder %s193, %s194
    %p203 = scmp.eq.s32.totalorder %s20, 0
    %p204 = por %p202, %p203
    %p205 = scmp.ne.s32.totalorder %s193, %s194
    %p206 = scmp.eq.s32.totalorder %s21, 6
    %p207 = por %p205, %p206
    %p209 = scmp.ne.s32.totalorder %s194, %s208
    %p210 = scmp.eq.s32.totalorder %s21, 0
    %p211 = por %p209, %p210
    %s212 = ssub.s32 %s15, %s22
    %p213 = scmp.eq.s32.totalorder %s212, 0
    %s215 = sadd.s32 %s214, 1
    %s216 = scalar_select %p213, %s214, %s215
    %p219 = pneg %p213
    %p220 = scmp.eq.s32.totalorder %s15, 6
    %p221 = por %p219, %p220
    %p222 = scmp.ne.s32.totalorder %s214, %s217
    %p223 = scmp.eq.s32.totalorder %s15, 0
    %p224 = por %p222, %p223
    %p225 = scmp.ne.s32.totalorder %s214, %s217
    %p226 = scmp.eq.s32.totalorder %s20, 6
    %p227 = por %p225, %p226
    %p228 = scmp.ne.s32.totalorder %s217, %s218
    %p229 = scmp.eq.s32.totalorder %s20, 0
    %p230 = por %p228, %p229
    %p231 = scmp.ne.s32.totalorder %s217, %s218
    %p232 = scmp.eq.s32.totalorder %s21, 6
    %p233 = por %p231, %p232
    %p235 = scmp.ne.s32.totalorder %s218, %s234
    %p236 = scmp.eq.s32.totalorder %s21, 0
    %p237 = por %p235, %p236
    %p238 = scmp.le.s32.totalorder 1, %s15
    %p239 = scmp.lt.s32.totalorder %s15, 8
    %p240 = pnand %p238, %p239
    %p241 = pneg %p240
    // Predicated region
    $region9: #{seq2seq_forward.3} parent=5 // pred_check
      _
    $region10: #{seq2seq_forward.3} parent=5 // pred_check_branch
      %243 = sbr.rel (%p240) target = $region12
    $region11: #{seq2seq_forward.3} parent=5 // pred_region
      %s244 = ssub.s32 %s15, 1
      // Predicated region
      $region13: #{seq2seq_forward.3} parent=11 // pred_check
        %p245 = pneg %p36
      $region14: #{seq2seq_forward.3} parent=11 // pred_check_branch
        %247 = sbr.rel (%p245) target = $region16
      $region15: #{seq2seq_forward.3} parent=11 // pred_region
        _
      $region16: #{seq2seq_forward.3} parent=11 // pred_fallthru
        _
      // Predicated region
      $region17: #{seq2seq_forward.3} parent=11 // pred_check
        %p248 = pneg %p57
      $region18: #{seq2seq_forward.3} parent=11 // pred_check_branch
        %250 = sbr.rel (%p248) target = $region20
      $region19: #{seq2seq_forward.3} parent=11 // pred_region
        _
      $region20: #{seq2seq_forward.3} parent=11 // pred_fallthru
        _
      // Predicated region
      $region21: #{seq2seq_forward.3} parent=11 // pred_check
        %p251 = pneg %p78
      $region22: #{seq2seq_forward.3} parent=11 // pred_check_branch
        %253 = sbr.rel (%p251) target = $region24
      $region23: #{seq2seq_forward.3} parent=11 // pred_region
        _
      $region24: #{seq2seq_forward.3} parent=11 // pred_fallthru
        _
      // Predicated region
      $region25: #{seq2seq_forward.3} parent=11 // pred_check
        %p254 = pneg %p99
      $region26: #{seq2seq_forward.3} parent=11 // pred_check_branch
        %256 = sbr.rel (%p254) target = $region28
      $region27: #{seq2seq_forward.3} parent=11 // pred_region
        _
      $region28: #{seq2seq_forward.3} parent=11 // pred_fallthru
        _
      // Predicated region
      $region29: #{seq2seq_forward.3} parent=11 // pred_check
        %p257 = pneg %p120
      $region30: #{seq2seq_forward.3} parent=11 // pred_check_branch
        %259 = sbr.rel (%p257) target = $region32
      $region31: #{seq2seq_forward.3} parent=11 // pred_region
        _
      $region32: #{seq2seq_forward.3} parent=11 // pred_fallthru
        _
      // Predicated region
      $region33: #{seq2seq_forward.3} parent=11 // pred_check
        %p260 = pneg %p141
      $region34: #{seq2seq_forward.3} parent=11 // pred_check_branch
        %262 = sbr.rel (%p260) target = $region36
      $region35: #{seq2seq_forward.3} parent=11 // pred_region
        _
      $region36: #{seq2seq_forward.3} parent=11 // pred_fallthru
        _
      // Predicated region
      $region37: #{seq2seq_forward.3} parent=11 // pred_check
        %p263 = pneg %p162
      $region38: #{seq2seq_forward.3} parent=11 // pred_check_branch
        %265 = sbr.rel (%p263) target = $region40
      $region39: #{seq2seq_forward.3} parent=11 // pred_region
        _
      $region40: #{seq2seq_forward.3} parent=11 // pred_fallthru
        _
      // Predicated region
      $region41: #{seq2seq_forward.3} parent=11 // pred_check
        %p266 = pneg %p183
      $region42: #{seq2seq_forward.3} parent=11 // pred_check_branch
        %268 = sbr.rel (%p266) target = $region44
      $region43: #{seq2seq_forward.3} parent=11 // pred_region
        _
      $region44: #{seq2seq_forward.3} parent=11 // pred_fallthru
        _
      // Predicated region
      $region45: #{seq2seq_forward.3} parent=11 // pred_check
        %p269 = pneg %p204
      $region46: #{seq2seq_forward.3} parent=11 // pred_check_branch
        %271 = sbr.rel (%p269) target = $region48
      $region47: #{seq2seq_forward.3} parent=11 // pred_region
        _
      $region48: #{seq2seq_forward.3} parent=11 // pred_fallthru
        _
    $region12: #{seq2seq_forward.3} parent=5 // pred_fallthru
      _
    %p272 = scmp.lt.s32.totalorder %s15, 7
    // Predicated region
    $region49: #{seq2seq_forward.3} parent=5 // pred_check
      %p273 = pneg %p272
    $region50: #{seq2seq_forward.3} parent=5 // pred_check_branch
      %275 = sbr.rel (%p273) target = $region52
    $region51: #{seq2seq_forward.3} parent=5 // pred_region
      _
    $region52: #{seq2seq_forward.3} parent=5 // pred_fallthru
      _
    %p276 = scmp.le.s32.totalorder 1, %s15
    %p277 = scmp.lt.s32.totalorder %s15, 8
    %p278 = pnand %p276, %p277
    %p279 = pneg %p278
    // Predicated region
    $region53: #{seq2seq_forward.3} parent=5 // pred_check
      _
    $region54: #{seq2seq_forward.3} parent=5 // pred_check_branch
      %281 = sbr.rel (%p278) target = $region56
    $region55: #{seq2seq_forward.3} parent=5 // pred_region
      %s282 = ssub.s32 %s15, 1
      %p283 = pneg %p36
      %p284 = pneg %p33
      %p285 = pneg %p57
      %p286 = pneg %p54
      %p287 = pneg %p78
      %p288 = pneg %p75
      %p289 = pneg %p99
      %p290 = pneg %p96
      %p291 = pneg %p120
      %p292 = pneg %p117
      %p293 = pneg %p141
      %p294 = pneg %p138
      %p295 = pneg %p162
      %p296 = pneg %p159
      %p297 = pneg %p183
      %p298 = pneg %p180
      %p299 = pneg %p204
      %p300 = pneg %p201
      %p301 = pneg %p230
      %p302 = pneg %p227
      %p303 = scmp.lt.s32.totalorder %s20, 6
      %s304 = scalar_select %p303, %s20, 6
      %s305 = smul.addr %s304, 8
      %s306 = scalar_lea.vmem %s9, %s305
      %p307 = scmp.lt.s32.totalorder %s20, 6
      %s308 = scalar_select %p307, %s20, 6
      %s309 = smul.addr %s308, 8
      %s310 = scalar_lea.vmem %s9, %s309
      %s312 = sadd.s32 %s20, 1
      %p313 = scmp.eq.s32.totalorder %s20, 0
      // Predicated region
      $region57: #{seq2seq_forward.3} parent=55 // pred_check
        %p314 = pneg %p313
      $region58: #{seq2seq_forward.3} parent=55 // pred_check_branch
        %316 = sbr.rel (%p314) target = $region60
      $region59: #{seq2seq_forward.3} parent=55 // pred_region
        %v317 = vld [vmem:[%s2] sm:$0xff]
        %v318 = vld [vmem:[%s2 + $0x8] sm:$0xff]
        %vm319 = vcmask 261120
        %320 = vst.msk [vmem:[#allocation2] sm:$0xff] %vm319, %v317
        %321 = vst.msk [vmem:[#allocation2 + $0x8] sm:$0xff] %vm319, %v318
        %v322 = vld [vmem:[%s3] sm:$0xff]
        %v323 = vld [vmem:[%s3 + $0x8] sm:$0xff]
        %324 = vst.msk [vmem:[#allocation3] sm:$0xff] %vm319, %v322
        %325 = vst.msk [vmem:[#allocation3 + $0x8] sm:$0xff] %vm319, %v323
        %v326 = vld [vmem:[%s0] sm:$0xf]
        %327 = vst [vmem:[#allocation4] sm:$0xf] %v326
      $region60: #{seq2seq_forward.3} parent=55 // pred_fallthru
        _
      %v328 = vld [vmem:[#allocation4] sm:$0xf]
      %v329 = vld [vmem:[%s4] sm:$0xf]
      %v330 = vld [vmem:[%s4 + $0x4] sm:$0xf]
      %v331 = vld [vmem:[%s4 + $0x8] sm:$0xf]
      %v332 = vld [vmem:[%s4 + $0xc] sm:$0xf]
      %v333 = vld [vmem:[%s4 + $0x10] sm:$0xf]
      %v334 = vld [vmem:[%s4 + $0x14] sm:$0xf]
      %v335 = vld [vmem:[%s4 + $0x18] sm:$0xf]
      %v336 = vld [vmem:[%s4 + $0x1c] sm:$0xf]
      %v337 = vld [vmem:[%s4 + $0x20] sm:$0xf]
      %v338 = vld [vmem:[%s4 + $0x24] sm:$0xf]
      %v339 = vld [vmem:[%s4 + $0x28] sm:$0xf]
      %v340 = vld [vmem:[%s4 + $0x2c] sm:$0xf]
      %v341 = vld [vmem:[%s4 + $0x30] sm:$0xf]
      %v342 = vld [vmem:[%s4 + $0x34] sm:$0xf]
      %v343 = vld [vmem:[%s4 + $0x38] sm:$0xf]
      %v344 = vld [vmem:[%s4 + $0x3c] sm:$0xf]
      %v361 = vunpack.c.l.b16 %v329
      %v362 = vunpack.c.l.b16 %v330
      %v363 = vunpack.c.l.b16 %v331
      %v364 = vunpack.c.l.b16 %v332
      %v365 = vunpack.c.l.b16 %v333
      %v366 = vunpack.c.l.b16 %v334
      %v367 = vunpack.c.l.b16 %v335
      %v368 = vunpack.c.l.b16 %v336
      %v369 = vunpack.c.l.b16 %v337
      %v370 = vunpack.c.l.b16 %v338
      %v371 = vunpack.c.l.b16 %v339
      %v372 = vunpack.c.l.b16 %v340
      %v373 = vunpack.c.l.b16 %v341
      %v374 = vunpack.c.l.b16 %v342
      %v375 = vunpack.c.l.b16 %v343
      %v376 = vunpack.c.l.b16 %v344
      %v377 = vpack.c.b16 %v362, %v361
      %v378 = vpack.c.b16 %v364, %v363
      %v379 = vpack.c.b16 %v366, %v365
      %v380 = vpack.c.b16 %v368, %v367
      %v381 = vpack.c.b16 %v370, %v369
      %v382 = vpack.c.b16 %v372, %v371
      %v383 = vpack.c.b16 %v374, %v373
      %v384 = vpack.c.b16 %v376, %v375
      %393 = vmatprep.subr.bf16.mxu0 0
      %394 = vmatpush1.bf16.msra.mxu0 %v377
      %395 = vmatprep.subr.bf16.mxu0 0
      %396 = vmatpush1.bf16.msra.mxu0 %v378
      %397 = vmatprep.subr.bf16.mxu0 0
      %398 = vmatpush1.bf16.msra.mxu0 %v379
      %399 = vmatprep.subr.bf16.mxu0 0
      %400 = vmatpush1.bf16.msra.mxu0 %v380
      %401 = vmatprep.subr.bf16.mxu0 0
      %402 = vmatpush1.bf16.msra.mxu0 %v381
      %403 = vmatprep.subr.bf16.mxu0 0
      %404 = vmatpush1.bf16.msra.mxu0 %v382
      %405 = vmatprep.subr.bf16.mxu0 0
      %406 = vmatpush1.bf16.msra.mxu0 %v383
      %407 = vmatprep.subr.bf16.mxu0 0
      %408 = vmatpush1.bf16.msra.mxu0 %v384
      %409 = vmatprep.subr.bf16.mxu0 0
      %410 = vmatpush1.bf16.msra.mxu0 0
      %411 = vmatprep.subr.bf16.mxu0 0
      %412 = vmatpush1.bf16.msra.mxu0 0
      %413 = vmatprep.subr.bf16.mxu0 0
      %414 = vmatpush1.bf16.msra.mxu0 0
      %415 = vmatprep.subr.bf16.mxu0 0
      %416 = vmatpush1.bf16.msra.mxu0 0
      %417 = vmatprep.subr.bf16.mxu0 0
      %418 = vmatpush1.bf16.msra.mxu0 0
      %419 = vmatprep.subr.bf16.mxu0 0
      %420 = vmatpush1.bf16.msra.mxu0 0
      %421 = vmatprep.subr.bf16.mxu0 0
      %422 = vmatpush1.bf16.msra.mxu0 0
      %423 = vmatprep.subr.bf16.mxu0 0
      %424 = vmatpush1.bf16.msra.mxu0 0
      %425 = vmatprep.mubr.bf16.mxu0 0
      %426 = vmatmul.mubr.bf16.gmra.mrb[0].mxu0 %v328
      %v427 = vpop.f32.mrb[0].mxu0
      %v428 = vadd.f32 0.0, %v427
      %v429 = vpop.f32.mrb[0].mxu0
      %v430 = vpop.f32.mrb[0].mxu0
      %v431 = vpop.f32.mrb[0].mxu0
      %432 = vdwg.mxu0
      %v433 = vld [vmem:[#allocation2] sm:$0xff]
      %v434 = vld [vmem:[#allocation3] sm:$0xff]
      %436 = vrot.lane.b32.xlu0 %v433, 32
      %v437 = vpop.permute.xlu0 %436
      %vm439 = vcmask 261120
      %v440 = vsel %vm439, %v428, %v437
      %v441 = vpack.c.bf16 %v440, %v440
      %v442 = vld [vmem:[%s5] sm:$0xf]
      %v443 = vld [vmem:[%s5 + $0x4] sm:$0xf]
      %v444 = vld [vmem:[%s5 + $0x8] sm:$0xf]
      %v445 = vld [vmem:[%s5 + $0xc] sm:$0xf]
      %v446 = vld [vmem:[%s5 + $0x10] sm:$0xf]
      %v447 = vld [vmem:[%s5 + $0x14] sm:$0xf]
      %v448 = vld [vmem:[%s5 + $0x18] sm:$0xf]
      %v449 = vld [vmem:[%s5 + $0x1c] sm:$0xf]
      %v450 = vld [vmem:[%s6] sm:$0x1]
      %v452 = vlaneseq
      %v453 = vshrl.u32 %v452, 7
      %v454 = vsub.s32 0, %v453
      %v455 = vrot.slane %v450, %v454
      %v465 = vunpack.c.l.b16 %v442
      %v466 = vunpack.c.l.b16 %v443
      %v467 = vunpack.c.l.b16 %v444
      %v468 = vunpack.c.l.b16 %v445
      %v469 = vunpack.c.l.b16 %v446
      %v470 = vunpack.c.l.b16 %v447
      %v471 = vunpack.c.l.b16 %v448
      %v472 = vunpack.c.l.b16 %v449
      %v473 = vpack.c.b16 %v466, %v465
      %v474 = vpack.c.b16 %v468, %v467
      %v475 = vpack.c.b16 %v470, %v469
      %v476 = vpack.c.b16 %v472, %v471
      %vm481 = vcmask 523264
      %v483 = vsel %vm481, %v441, 0
      %485 = vmatprep.subr.bf16.mxu0 0
      %486 = vmatpush1.bf16.msra.mxu0 %v473
      %487 = vmatprep.subr.bf16.mxu0 0
      %488 = vmatpush1.bf16.msra.mxu0 %v474
      %489 = vmatprep.subr.bf16.mxu0 0
      %490 = vmatpush1.bf16.msra.mxu0 %v475
      %491 = vmatprep.subr.bf16.mxu0 0
      %492 = vmatpush1.bf16.msra.mxu0 %v476
      %493 = vmatprep.subr.bf16.mxu0 0
      %494 = vmatpush1.bf16.msra.mxu0 0
      %495 = vmatprep.subr.bf16.mxu0 0
      %496 = vmatpush1.bf16.msra.mxu0 0
      %497 = vmatprep.subr.bf16.mxu0 0
      %498 = vmatpush1.bf16.msra.mxu0 0
      %499 = vmatprep.subr.bf16.mxu0 0
      %500 = vmatpush1.bf16.msra.mxu0 0
      %501 = vmatprep.subr.bf16.mxu0 0
      %502 = vmatpush1.bf16.msra.mxu0 0
      %503 = vmatprep.subr.bf16.mxu0 0
      %504 = vmatpush1.bf16.msra.mxu0 0
      %505 = vmatprep.subr.bf16.mxu0 0
      %506 = vmatpush1.bf16.msra.mxu0 0
      %507 = vmatprep.subr.bf16.mxu0 0
      %508 = vmatpush1.bf16.msra.mxu0 0
      %509 = vmatprep.subr.bf16.mxu0 0
      %510 = vmatpush1.bf16.msra.mxu0 0
      %511 = vmatprep.subr.bf16.mxu0 0
      %512 = vmatpush1.bf16.msra.mxu0 0
      %513 = vmatprep.subr.bf16.mxu0 0
      %514 = vmatpush1.bf16.msra.mxu0 0
      %515 = vmatprep.subr.bf16.mxu0 0
      %516 = vmatpush1.bf16.msra.mxu0 0
      %517 = vmatprep.mubr.bf16.mxu0 0
      %518 = vmatmul.mubr.bf16.gmra.mrb[0].mxu0 %v483
      %v519 = vpop.f32.mrb[0].mxu0
      %v520 = vadd.f32 %v455, %v519
      %v521 = vpop.f32.mrb[0].mxu0
      %v522 = vpop.f32.mrb[0].mxu0
      %v523 = vpop.f32.mrb[0].mxu0
      %524 = vdwg.mxu0
      %v525 = vxor.u32 %v520, 2147483648
      %v526 = vmul.f32 %v525, 1.442695
      %v527 = vpow.pop %v526
      %v528 = vadd.f32 %v527, 1.0
      %v529 = vrcp.pop %v528
      %v530 = vmul.f32 1.0, %v529
      %v531 = vtanh.pop %v520
      %533 = vrot.lane.b32.xlu0 %v434, 32
      %v534 = vpop.permute.xlu0 %533
      %v536 = vmul.f32 %v530, %v534
      %538 = vrot.lane.b32.xlu0 %v531, 64
      %v539 = vpop.permute.xlu0 %538
      %v541 = vmul.f32 %v530, %v539
      %543 = vrot.lane.b32.xlu0 %v541, 32
      %v544 = vpop.permute.xlu0 %543
      %v546 = vadd.f32 %v536, %v544
      %v547 = vtanh.pop %v546
      %549 = vrot.lane.b32.xlu0 %v547, 64
      %v550 = vpop.permute.xlu0 %549
      %v552 = vmul.f32 %v530, %v550
      %554 = vrot.lane.b32.xlu0 %v552, 32
      %v555 = vpop.permute.xlu0 %554
      %557 = vst.msk [vmem:[#allocation2] sm:$0xff] %vm439, %v555
      %559 = vrot.lane.b32.xlu0 %v546, 96
      %v560 = vpop.permute.xlu0 %559
      %562 = vst.msk [vmem:[#allocation3] sm:$0xff] %vm439, %v560
      %s563 = scalar_lea.vmem [#allocation2], 8
      %v564 = vld [vmem:[%s563] sm:$0xff]
      %s565 = scalar_lea.vmem [#allocation3], 8
      %v566 = vld [vmem:[%s565] sm:$0xff]
      %568 = vrot.lane.b32.xlu0 %v564, 32
      %v569 = vpop.permute.xlu0 %568
      %v571 = vsel %vm439, %v555, %v569
      %v572 = vpack.c.bf16 %v571, %v571
      %s573 = scalar_lea.vmem %s5, 32
      %v574 = vld [vmem:[%s573] sm:$0xf]
      %v575 = vld [vmem:[%s573 + $0x4] sm:$0xf]
      %v576 = vld [vmem:[%s573 + $0x8] sm:$0xf]
      %v577 = vld [vmem:[%s573 + $0xc] sm:$0xf]
      %v578 = vld [vmem:[%s573 + $0x10] sm:$0xf]
      %v579 = vld [vmem:[%s573 + $0x14] sm:$0xf]
      %v580 = vld [vmem:[%s573 + $0x18] sm:$0xf]
      %v581 = vld [vmem:[%s573 + $0x1c] sm:$0xf]
      %s582 = scalar_lea.vmem %s6, 1
      %v583 = vld [vmem:[%s582] sm:$0x1]
      %v585 = vlaneseq
      %v586 = vshrl.u32 %v585, 7
      %v587 = vsub.s32 0, %v586
      %v588 = vrot.slane %v583, %v587
      %v598 = vunpack.c.l.b16 %v574
      %v599 = vunpack.c.l.b16 %v575
      %v600 = vunpack.c.l.b16 %v576
      %v601 = vunpack.c.l.b16 %v577
      %v602 = vunpack.c.l.b16 %v578
      %v603 = vunpack.c.l.b16 %v579
      %v604 = vunpack.c.l.b16 %v580
      %v605 = vunpack.c.l.b16 %v581
      %v606 = vpack.c.b16 %v599, %v598
      %v607 = vpack.c.b16 %v601, %v600
      %v608 = vpack.c.b16 %v603, %v602
      %v609 = vpack.c.b16 %v605, %v604
      %v615 = vsel %vm481, %v572, 0
      %617 = vmatprep.subr.bf16.mxu0 0
      %618 = vmatpush1.bf16.msra.mxu0 %v606
      %619 = vmatprep.subr.bf16.mxu0 0
      %620 = vmatpush1.bf16.msra.mxu0 %v607
      %621 = vmatprep.subr.bf16.mxu0 0
      %622 = vmatpush1.bf16.msra.mxu0 %v608
      %623 = vmatprep.subr.bf16.mxu0 0
      %624 = vmatpush1.bf16.msra.mxu0 %v609
      %625 = vmatprep.subr.bf16.mxu0 0
      %626 = vmatpush1.bf16.msra.mxu0 0
      %627 = vmatprep.subr.bf16.mxu0 0
      %628 = vmatpush1.bf16.msra.mxu0 0
      %629 = vmatprep.subr.bf16.mxu0 0
      %630 = vmatpush1.bf16.msra.mxu0 0
      %631 = vmatprep.subr.bf16.mxu0 0
      %632 = vmatpush1.bf16.msra.mxu0 0
      %633 = vmatprep.subr.bf16.mxu0 0
      %634 = vmatpush1.bf16.msra.mxu0 0
      %635 = vmatprep.subr.bf16.mxu0 0
      %636 = vmatpush1.bf16.msra.mxu0 0
      %637 = vmatprep.subr.bf16.mxu0 0
      %638 = vmatpush1.bf16.msra.mxu0 0
      %639 = vmatprep.subr.bf16.mxu0 0
      %640 = vmatpush1.bf16.msra.mxu0 0
      %641 = vmatprep.subr.bf16.mxu0 0
      %642 = vmatpush1.bf16.msra.mxu0 0
      %643 = vmatprep.subr.bf16.mxu0 0
      %644 = vmatpush1.bf16.msra.mxu0 0
      %645 = vmatprep.subr.bf16.mxu0 0
      %646 = vmatpush1.bf16.msra.mxu0 0
      %647 = vmatprep.subr.bf16.mxu0 0
      %648 = vmatpush1.bf16.msra.mxu0 0
      %649 = vmatprep.mubr.bf16.mxu0 0
      %650 = vmatmul.mubr.bf16.gmra.mrb[0].mxu0 %v615
      %v651 = vpop.f32.mrb[0].mxu0
      %v652 = vadd.f32 %v588, %v651
      %v653 = vpop.f32.mrb[0].mxu0
      %v654 = vpop.f32.mrb[0].mxu0
      %v655 = vpop.f32.mrb[0].mxu0
      %656 = vdwg.mxu0
      %v657 = vxor.u32 %v652, 2147483648
      %v658 = vmul.f32 %v657, 1.442695
      %v659 = vpow.pop %v658
      %v660 = vadd.f32 %v659, 1.0
      %v661 = vrcp.pop %v660
      %v662 = vmul.f32 1.0, %v661
      %v663 = vtanh.pop %v652
      %665 = vrot.lane.b32.xlu0 %v566, 32
      %v666 = vpop.permute.xlu0 %665
      %v668 = vmul.f32 %v662, %v666
      %670 = vrot.lane.b32.xlu0 %v663, 64
      %v671 = vpop.permute.xlu0 %670
      %v673 = vmul.f32 %v662, %v671
      %675 = vrot.lane.b32.xlu0 %v673, 32
      %v676 = vpop.permute.xlu0 %675
      %v678 = vadd.f32 %v668, %v676
      %v679 = vtanh.pop %v678
      %681 = vrot.lane.b32.xlu0 %v679, 64
      %v682 = vpop.permute.xlu0 %681
      %v684 = vmul.f32 %v662, %v682
      %686 = vrot.lane.b32.xlu0 %v684, 32
      %v687 = vpop.permute.xlu0 %686
      %689 = vst.msk [vmem:[%s563] sm:$0xff] %vm439, %v687
      %691 = vrot.lane.b32.xlu0 %v678, 96
      %v692 = vpop.permute.xlu0 %691
      %694 = vst.msk [vmem:[%s565] sm:$0xff] %vm439, %v692
      %v695 = vpack.c.bf16 %v684, %v684
      %v696 = vld [vmem:[%s7] sm:$0xf]
      %v697 = vld [vmem:[%s7 + $0x4] sm:$0xf]
      %v698 = vld [vmem:[%s7 + $0x8] sm:$0xf]
      %v699 = vld [vmem:[%s7 + $0xc] sm:$0xf]
      %v700 = vld [vmem:[%s8] sm:$0x1]
      %v702 = vlaneseq
      %v703 = vshrl.u32 %v702, 7
      %v704 = vsub.s32 0, %v703
      %v705 = vrot.slane %v700, %v704
      %708 = vrot.lane.b32.xlu0 %v695, 32
      %v709 = vpop.permute.xlu0 %708
      %v714 = vunpack.c.l.b16 %v696
      %v715 = vunpack.c.l.b16 %v697
      %v716 = vunpack.c.l.b16 %v698
      %v717 = vunpack.c.l.b16 %v699
      %v718 = vpack.c.b16 %v715, %v714
      %v719 = vpack.c.b16 %v717, %v716
      %v723 = vsel %vm439, %v709, 0
      %725 = vmatprep.subr.bf16.mxu0 0
      %726 = vmatpush1.bf16.msra.mxu0 %v718
      %727 = vmatprep.subr.bf16.mxu0 0
      %728 = vmatpush1.bf16.msra.mxu0 %v719
      %729 = vmatprep.subr.bf16.mxu0 0
      %730 = vmatpush1.bf16.msra.mxu0 0
      %731 = vmatprep.subr.bf16.mxu0 0
      %732 = vmatpush1.bf16.msra.mxu0 0
      %733 = vmatprep.subr.bf16.mxu0 0
      %734 = vmatpush1.bf16.msra.mxu0 0
      %735 = vmatprep.subr.bf16.mxu0 0
      %736 = vmatpush1.bf16.msra.mxu0 0
      %737 = vmatprep.subr.bf16.mxu0 0
      %738 = vmatpush1.bf16.msra.mxu0 0
      %739 = vmatprep.subr.bf16.mxu0 0
      %740 = vmatpush1.bf16.msra.mxu0 0
      %741 = vmatprep.subr.bf16.mxu0 0
      %742 = vmatpush1.bf16.msra.mxu0 0
      %743 = vmatprep.subr.bf16.mxu0 0
      %744 = vmatpush1.bf16.msra.mxu0 0
      %745 = vmatprep.subr.bf16.mxu0 0
      %746 = vmatpush1.bf16.msra.mxu0 0
      %747 = vmatprep.subr.bf16.mxu0 0
      %748 = vmatpush1.bf16.msra.mxu0 0
      %749 = vmatprep.subr.bf16.mxu0 0
      %750 = vmatpush1.bf16.msra.mxu0 0
      %751 = vmatprep.subr.bf16.mxu0 0
      %752 = vmatpush1.bf16.msra.mxu0 0
      %753 = vmatprep.subr.bf16.mxu0 0
      %754 = vmatpush1.bf16.msra.mxu0 0
      %755 = vmatprep.subr.bf16.mxu0 0
      %756 = vmatpush1.bf16.msra.mxu0 0
      %757 = vmatprep.mubr.bf16.mxu0 0
      %758 = vmatmul.mubr.bf16.gmra.mrb[0].mxu0 %v723
      %v759 = vpop.f32.mrb[0].mxu0
      %v760 = vadd.f32 %v705, %v759
      %v761 = vpop.f32.mrb[0].mxu0
      %v762 = vpop.f32.mrb[0].mxu0
      %v763 = vpop.f32.mrb[0].mxu0
      %764 = vdwg.mxu0
      %765 = vst [vmem:[%s310] sm:$0xff] %v760
      %v766 = vlaneseq
      %v767 = vand.u32 %v766, 127
      %v768 = vcvt.s32.f32 %v767
      %vm769 = vcmp.lt.f32.partialorder %v768, 32.0
      %v770 = vsel %vm769, %v760, -inf
      %771 = vmax.xlane.f32.xlu0 %v770
      %v772 = vpop.xlane.xlu0 %771
      %vm773 = vcmp.eq.f32.partialorder %v770, %v772
      %v774 = vsel %vm773, %v768, 128.0
      %775 = vmin.xlane.f32.xlu0 %v774
      %v776 = vpop.xlane.xlu0 %775
      %vm777 = vcmp.eq.f32.partialorder %v768, %v776
      %v778 = vsel %vm777, 1, 0
      %v779 = vcvt.s32.f32 %v778
      %s780 = scalar_lea.vmem %s1, %s312
      %v781 = vld [vmem:[%s780] sm:$0x1]
      %s782 = smul.addr %s312, 4
      %s783 = scalar_lea.vmem %s0, %s782
      %v784 = vld [vmem:[%s783] sm:$0xf]
      %v785 = vunpack.c.l.bf16 %v784
      %v787 = vlaneseq
      %v788 = vshrl.u32 %v787, 7
      %v789 = vsub.s32 0, %v788
      %v790 = vrot.slane %v781, %v789
      %v792 = vmul.f32 %v790, %v785
      %v793 = vsub.f32 1.0, %v781
      %v795 = vlaneseq
      %v796 = vshrl.u32 %v795, 7
      %v797 = vsub.s32 0, %v796
      %v798 = vrot.slane %v793, %v797
      %v800 = vmul.f32 %v798, %v779
      %v801 = vadd.f32 %v792, %v800
      %v802 = vpack.c.bf16 %v801, %v801
      %803 = vst [vmem:[#allocation4] sm:$0xf] %v802
      %p804 = scmp.lt.s32.totalorder %s20, 6
      %s805 = scalar_select %p804, %s20, 6
      %s806 = smul.addr %s805, 8
      %s807 = scalar_lea.vmem %s9, %s806
      // Predicated region
      $region61: #{seq2seq_forward.3} parent=55 // pred_check
        %p808 = pneg %p227
      $region62: #{seq2seq_forward.3} parent=55 // pred_check_branch
        %810 = sbr.rel (%p808) target = $region64
      $region63: #{seq2seq_forward.3} parent=55 // pred_region
        _
      $region64: #{seq2seq_forward.3} parent=55 // pred_fallthru
        _
    $region56: #{seq2seq_forward.3} parent=5 // pred_fallthru
      _
    %p811 = scmp.le.s32.totalorder 2, %s15
    // Predicated region
    $region65: #{seq2seq_forward.3} parent=5 // pred_check
      %p812 = pneg %p811
    $region66: #{seq2seq_forward.3} parent=5 // pred_check_branch
      %814 = sbr.rel (%p812) target = $region68
    $region67: #{seq2seq_forward.3} parent=5 // pred_region
      %s815 = ssub.s32 %s15, 2
      // Predicated region
      $region69: #{seq2seq_forward.3} parent=67 // pred_check
        %p816 = pneg %p233
      $region70: #{seq2seq_forward.3} parent=67 // pred_check_branch
        %818 = sbr.rel (%p816) target = $region72
      $region71: #{seq2seq_forward.3} parent=67 // pred_region
        %p819 = scmp.lt.s32.totalorder %s21, 6
        %s820 = scalar_select %p819, %s21, 6
        %s821 = smul.addr %s820, 8
        %s822 = scalar_lea.vmem %s9, %s821
      $region72: #{seq2seq_forward.3} parent=67 // pred_fallthru
        _
    $region68: #{seq2seq_forward.3} parent=5 // pred_fallthru
      _
  $region6: #{seq2seq_forward.3} parent=0 // loop_footer
    %s19 = sadd.s32 1, %s15
  $region7: #{seq2seq_forward.3} parent=0 // loop_footer_branch
    %14 = sbr.rel target = $region3
  $region8: #{seq2seq_forward.3} parent=0 // loop_exit
    _

</llo_original>
